<compile_context>
chip_gen: v6e
topology: v6e:2x2x1
jax: 0.10.0
libtpu: 0.0.40
codegen_flags: <defaults>
</compile_context>

<pallas_src>
import functools
import math

import jax
import jax.numpy as jnp
from jax.experimental import pallas as pl
from jax.experimental.pallas import tpu as pltpu


# ----------------------------------------------------------------------------
# In-kernel math helpers (all float32 element-wise)
# ----------------------------------------------------------------------------
def _erf(x):
    # Abramowitz & Stegun 7.1.26, |err| < 1.5e-7; VPU ops + EUP exp only.
    a1, a2, a3, a4, a5 = 0.254829592, -0.284496736, 1.421413741, -1.453152027, 1.061405429
    p = 0.3275911
    sgn = jnp.where(x >= 0.0, 1.0, -1.0)
    z = jnp.abs(x)
    t = 1.0 / (1.0 + p * z)
    poly = ((((a5 * t + a4) * t + a3) * t + a2) * t + a1) * t
    return sgn * (1.0 - poly * jnp.exp(-z * z))


def _gelu_exact(x):
    # PyTorch nn.GELU() default: 0.5*x*(1+erf(x/sqrt(2)))
    return 0.5 * x * (1.0 + _erf(x * (1.0 / math.sqrt(2.0))))


def _layernorm(x, g, b):
    # row-wise LayerNorm over the lane dim, eps = 1e-5 (PyTorch default)
    mu = jnp.mean(x, axis=-1, keepdims=True)
    xc = x - mu
    var = jnp.mean(xc * xc, axis=-1, keepdims=True)
    return xc * jax.lax.rsqrt(var + 1e-5) * g + b


# ----------------------------------------------------------------------------
# The fused kernel: patch embedding + depth x (shared) transformer block
# ----------------------------------------------------------------------------
def vit_fused_kernel(patches_ref, conv_wt_ref, add_ref, head_ones_ref,
                     ln1_g_ref, ln1_b_ref, wqkv_ref, bqkv_ref, wo_ref, bo_ref,
                     ln2_g_ref, ln2_b_ref, wff_ref, bff_ref,
                     o_ref, *, B, S_pad, E, depth):
    f32, bf16 = jnp.float32, jnp.bfloat16

    # ---- PatchEmbedding prologue: one bf16 matmul + one add.  `add_ref` holds
    #      cls+pos[0] on the cls rows, conv bias + pos[s] on patch rows and 0 on
    #      the sublane-padding rows; the matching rows of `patches_ref` are the
    #      flattened patches (zeros elsewhere), so no unaligned stores are needed.
    x = (jnp.dot(patches_ref[...], conv_wt_ref[...],
                 preferred_element_type=f32) + add_ref[...])            # (M, E) f32

    # weights hoisted once (values, VMEM-resident) above the unrolled loop
    head_ones = head_ones_ref[...]        # (E, E) bf16 block-diag: within-head lane sum
    ln1_g, ln1_b = ln1_g_ref[...], ln1_b_ref[...]
    wqkv, bqkv = wqkv_ref[...], bqkv_ref[...]
    wo, bo = wo_ref[...], bo_ref[...]
    ln2_g, ln2_b = ln2_g_ref[...], ln2_b_ref[...]
    wff, bff = wff_ref[...], bff_ref[...]

    # ---- depth x shared-weight transformer block (static depth -> unrolled) ---
    for _ in range(depth):
        # residual branch 1: LayerNorm -> MHA -> out-proj -> + residual
        # (attention runs over the image-batch axis: batch_first=False quirk)
        xn = _layernorm(x, ln1_g, ln1_b)
        qkv = (jnp.dot(xn.astype(bf16), wqkv, preferred_element_type=f32) + bqkv)
        q = qkv[:, 0:E]                   # 1/sqrt(d) already folded into W_q / b_q
        k = qkv[:, E:2 * E]
        v = qkv[:, 2 * E:3 * E]

        # Lane-dense attention over the length-B "sequence", batched over
        # (patch, head): the per-head d-lane score reduction is one bf16 MXU
        # pass ((q*k) @ head_ones, broadcast back over the head's own lanes).
        # Pairing r matches token (b, s) with image (b+r)%B via a tile-aligned
        # row rotation by S_pad (pure data movement, no MXU).  Online
        # (flash-style) max/num/den accumulation keeps live state O(1) in B.
        s_r = jnp.dot((q * k).astype(bf16), head_ones, preferred_element_type=f32)
        m = s_r                           # pairing j == i
        num = v
        den = jnp.ones_like(s_r)
        k_r, v_r = k, v
        for _r in range(B - 1):
            k_r = jnp.concatenate([k_r[S_pad:, :], k_r[:S_pad, :]], axis=0)
            v_r = jnp.concatenate([v_r[S_pad:, :], v_r[:S_pad, :]], axis=0)
            s_r = jnp.dot((q * k_r).astype(bf16), head_ones,
                          preferred_element_type=f32)
            m_new = jnp.maximum(m, s_r)
            alpha = jnp.exp(m - m_new)    # f32 softmax math
            p = jnp.exp(s_r - m_new)
            num = alpha * num + p * v_r
            den = alpha * den + p
            m = m_new
        ao = num * pl.reciprocal(den, approx=True)                       # (M, E)

        x = x + jnp.dot(ao.astype(bf16), wo, preferred_element_type=f32) + bo

        # residual branch 2: LayerNorm -> Linear -> exact GELU -> + residual
        xn2 = _layernorm(x, ln2_g, ln2_b)
        h = jnp.dot(xn2.astype(bf16), wff, preferred_element_type=f32) + bff
        x = x + _gelu_exact(h)

    o_ref[...] = x                        # single aligned lane-dense store


def _whole_spec(shape):
    return pl.BlockSpec(shape, lambda i: (0,) * len(shape))


# ----------------------------------------------------------------------------
# Parameter construction (deterministic, synthetic).  Matmul weights are stored
# pre-transposed as (in_features, out_features) so no transpose is re-emitted
# inside the forward pass.
# ----------------------------------------------------------------------------
def init_params(key, in_channels, patch_size, img_size):
    E = in_channels * patch_size ** 2
    seq = (img_size // patch_size) ** 2 + 1
    ks = jax.random.split(key, 9)
    s = 0.02
    return dict(
        conv_w_t=jax.random.normal(ks[0], (in_channels * patch_size ** 2, E), jnp.float32) * s,
        conv_b=jax.random.normal(ks[1], (E,), jnp.float32) * s,
        cls=jax.random.normal(ks[2], (1, 1, E), jnp.float32) * s,
        pos=jax.random.normal(ks[3], (seq, E), jnp.float32) * s,
        ln1_g=jnp.ones((E,), jnp.float32),
        ln1_b=jnp.zeros((E,), jnp.float32),
        in_proj_w_t=jax.random.normal(ks[4], (E, 3 * E), jnp.float32) * s,
        in_proj_b=jax.random.normal(ks[5], (3 * E,), jnp.float32) * s,
        out_proj_w_t=jax.random.normal(ks[6], (E, E), jnp.float32) * s,
        out_proj_b=jnp.zeros((E,), jnp.float32),
        ln2_g=jnp.ones((E,), jnp.float32),
        ln2_b=jnp.zeros((E,), jnp.float32),
        ff_w_t=jax.random.normal(ks[7], (E, E), jnp.float32) * s,
        ff_b=jax.random.normal(ks[8], (E,), jnp.float32) * s,
    )


# ----------------------------------------------------------------------------
# Forward pass wrapper (patch extraction + constant prep are layout plumbing;
# all compute is in the single fused Pallas kernel)
# ----------------------------------------------------------------------------
def vision_transformer_forward(x, params, *, patch_size, num_heads, depth):
    B, C, H, W = x.shape                      # NCHW, like PyTorch Conv2d input
    ps = patch_size
    nH, nW = H // ps, W // ps
    N = nH * nW
    K = C * ps * ps
    E = K
    S = N + 1
    S_pad = ((S + 7) // 8) * 8                # sublane-align every per-image row block
    M = B * S_pad
    d = E // num_heads
    scale = 1.0 / math.sqrt(d)
    bf16 = jnp.bfloat16

    # --- patch extraction + row padding (pure layout plumbing, done once) ----
    patches = (x.reshape(B, C, nH, ps, nW, ps)
                .transpose(0, 2, 4, 1, 3, 5)
                .reshape(B, N, K)).astype(jnp.float32)
    patches_pad = (jnp.zeros((B, S_pad, K), jnp.float32)
                   .at[:, 1:N + 1, :].set(patches)
                   .reshape(M, K).astype(bf16))

    # --- additive prologue constant: cls+pos[0] on cls rows, conv bias + pos[s]
    #     on patch rows, 0 on the padding rows --------------------------------
    row_add = jnp.zeros((S_pad, E), jnp.float32)
    row_add = row_add.at[0, :].set(params["cls"].reshape(E) + params["pos"][0])
    row_add = row_add.at[1:N + 1, :].set(params["conv_b"][None, :] + params["pos"][1:])
    add_full = jnp.tile(row_add[None], (B, 1, 1)).reshape(M, E)

    # --- bf16 matmul operands (cast once); 1/sqrt(d) folded into Q columns ----
    conv_wt = params["conv_w_t"].astype(bf16)
    wqkv = params["in_proj_w_t"].at[:, :E].multiply(scale).astype(bf16)
    bqkv = params["in_proj_b"].at[:E].multiply(scale)[None, :]
    wo = params["out_proj_w_t"].astype(bf16)
    wff = params["ff_w_t"].astype(bf16)
    bo = params["out_proj_b"][None, :]
    bff = params["ff_b"][None, :]
    ln1_g, ln1_b = params["ln1_g"][None, :], params["ln1_b"][None, :]
    ln2_g, ln2_b = params["ln2_g"][None, :], params["ln2_b"][None, :]

    # block-diagonal "same-head" ones (exact 0/1, bf16): within-head lane
    # reduction as one bf16 MXU pass inside the kernel.
    lane = jnp.arange(E)
    head_ones = (lane[:, None] // d == lane[None, :] // d).astype(bf16)

    inputs = (patches_pad, conv_wt, add_full, head_ones, ln1_g, ln1_b,
              wqkv, bqkv, wo, bo, ln2_g, ln2_b, wff, bff)

    kern = functools.partial(vit_fused_kernel, B=B, S_pad=S_pad, E=E, depth=depth)
    out = pl.pallas_call(
        kern,
        out_shape=jax.ShapeDtypeStruct((M, E), jnp.float32),
        grid=(1,),
        in_specs=[_whole_spec(a.shape) for a in inputs],
        out_specs=_whole_spec((M, E)),
        compiler_params=pltpu.CompilerParams(dimension_semantics=("arbitrary",)),
    )(*inputs)
    return out.reshape(B, S_pad, E)[:, :S, :]


# ----------------------------------------------------------------------------
if __name__ == "__main__":
    # Small synthetic config: emb_dim = in_channels * patch_size**2 = 2*64 = 128
    in_channels, patch_size, num_heads = 2, 8, 4
    img_size = 32
    depth = 2
    B = 2

    key = jax.random.PRNGKey(0)
    k_x, k_p = jax.random.split(key)
    x = jax.random.normal(k_x, (B, in_channels, img_size, img_size), jnp.float32)
    params = init_params(k_p, in_channels, patch_size, img_size)

    fwd = jax.jit(functools.partial(vision_transformer_forward,
                                    patch_size=patch_size,
                                    num_heads=num_heads,
                                    depth=depth))
    out = fwd(x, params)
    jax.block_until_ready(out)

    S = (img_size // patch_size) ** 2 + 1
    E = in_channels * patch_size ** 2
    assert out.shape == (B, S, E)
    assert bool(jnp.all(jnp.isfinite(out)))
    print("KERNEL_OK")
</pallas_src>

<mosaic_0001>
module attributes {stable_mosaic.version = 11 : i64} {
  func.func @vit_fused_kernel(%arg0: i32, %arg1: memref<48x128xbf16, #tpu.memory_space<vmem>>, %arg2: memref<128x128xbf16, #tpu.memory_space<vmem>>, %arg3: memref<48x128xf32, #tpu.memory_space<vmem>>, %arg4: memref<128x128xbf16, #tpu.memory_space<vmem>>, %arg5: memref<1x128xf32, #tpu.memory_space<vmem>>, %arg6: memref<1x128xf32, #tpu.memory_space<vmem>>, %arg7: memref<128x384xbf16, #tpu.memory_space<vmem>>, %arg8: memref<1x384xf32, #tpu.memory_space<vmem>>, %arg9: memref<128x128xbf16, #tpu.memory_space<vmem>>, %arg10: memref<1x128xf32, #tpu.memory_space<vmem>>, %arg11: memref<1x128xf32, #tpu.memory_space<vmem>>, %arg12: memref<1x128xf32, #tpu.memory_space<vmem>>, %arg13: memref<128x128xbf16, #tpu.memory_space<vmem>>, %arg14: memref<1x128xf32, #tpu.memory_space<vmem>>, %arg15: memref<48x128xf32, #tpu.memory_space<vmem>>) attributes {dimension_semantics = [#tpu.dimension_semantics<arbitrary>], iteration_bounds = array<i64: 1>, scalar_prefetch = 0 : i64, scratch_operands = 0 : i64, tpu.core_type = #tpu.core_type<tc>, window_params = [{pipeline_mode = #tpu.pipeline_mode<synchronous>, transform_indices = @transform_0, window_bounds = array<i64: 48, 128>}, {pipeline_mode = #tpu.pipeline_mode<synchronous>, transform_indices = @transform_1, window_bounds = array<i64: 128, 128>}, {pipeline_mode = #tpu.pipeline_mode<synchronous>, transform_indices = @transform_2, window_bounds = array<i64: 48, 128>}, {pipeline_mode = #tpu.pipeline_mode<synchronous>, transform_indices = @transform_3, window_bounds = array<i64: 128, 128>}, {pipeline_mode = #tpu.pipeline_mode<synchronous>, transform_indices = @transform_4, window_bounds = array<i64: 1, 128>}, {pipeline_mode = #tpu.pipeline_mode<synchronous>, transform_indices = @transform_5, window_bounds = array<i64: 1, 128>}, {pipeline_mode = #tpu.pipeline_mode<synchronous>, transform_indices = @transform_6, window_bounds = array<i64: 128, 384>}, {pipeline_mode = #tpu.pipeline_mode<synchronous>, transform_indices = @transform_7, window_bounds = array<i64: 1, 384>}, {pipeline_mode = #tpu.pipeline_mode<synchronous>, transform_indices = @transform_8, window_bounds = array<i64: 128, 128>}, {pipeline_mode = #tpu.pipeline_mode<synchronous>, transform_indices = @transform_9, window_bounds = array<i64: 1, 128>}, {pipeline_mode = #tpu.pipeline_mode<synchronous>, transform_indices = @transform_10, window_bounds = array<i64: 1, 128>}, {pipeline_mode = #tpu.pipeline_mode<synchronous>, transform_indices = @transform_11, window_bounds = array<i64: 1, 128>}, {pipeline_mode = #tpu.pipeline_mode<synchronous>, transform_indices = @transform_12, window_bounds = array<i64: 128, 128>}, {pipeline_mode = #tpu.pipeline_mode<synchronous>, transform_indices = @transform_13, window_bounds = array<i64: 1, 128>}, {pipeline_mode = #tpu.pipeline_mode<synchronous>, transform_indices = @transform_14, window_bounds = array<i64: 48, 128>}]} {
    %c0 = arith.constant 0 : index
    %c0_0 = arith.constant 0 : index
    %0 = vector.load %arg1[%c0, %c0_0] : memref<48x128xbf16, #tpu.memory_space<vmem>>, vector<48x128xbf16>
    %c0_1 = arith.constant 0 : index
    %c0_2 = arith.constant 0 : index
    %1 = vector.load %arg2[%c0_1, %c0_2] : memref<128x128xbf16, #tpu.memory_space<vmem>>, vector<128x128xbf16>
    %cst = arith.constant dense<0.000000e+00> : vector<48x128xf32>
    %2 = tpu.matmul %0, %1, %cst {dimension_numbers = #tpu.dot_dimension_numbers<[1], [0], [0], [1], [0, 0, 1, 1], [], []>} : vector<48x128xbf16>, vector<128x128xbf16>, vector<48x128xf32> -> vector<48x128xf32>
    %c0_3 = arith.constant 0 : index
    %c0_4 = arith.constant 0 : index
    %3 = vector.load %arg3[%c0_3, %c0_4] : memref<48x128xf32, #tpu.memory_space<vmem>>, vector<48x128xf32>
    %4 = arith.addf %2, %3 : vector<48x128xf32>
    %c0_5 = arith.constant 0 : index
    %c0_6 = arith.constant 0 : index
    %5 = vector.load %arg4[%c0_5, %c0_6] : memref<128x128xbf16, #tpu.memory_space<vmem>>, vector<128x128xbf16>
    %c0_7 = arith.constant 0 : index
    %c0_8 = arith.constant 0 : index
    %6 = vector.load %arg5[%c0_7, %c0_8] : memref<1x128xf32, #tpu.memory_space<vmem>>, vector<1x128xf32>
    %c0_9 = arith.constant 0 : index
    %c0_10 = arith.constant 0 : index
    %7 = vector.load %arg6[%c0_9, %c0_10] : memref<1x128xf32, #tpu.memory_space<vmem>>, vector<1x128xf32>
    %c0_11 = arith.constant 0 : index
    %c0_12 = arith.constant 0 : index
    %8 = vector.load %arg7[%c0_11, %c0_12] : memref<128x384xbf16, #tpu.memory_space<vmem>>, vector<128x384xbf16>
    %c0_13 = arith.constant 0 : index
    %c0_14 = arith.constant 0 : index
    %9 = vector.load %arg8[%c0_13, %c0_14] : memref<1x384xf32, #tpu.memory_space<vmem>>, vector<1x384xf32>
    %c0_15 = arith.constant 0 : index
    %c0_16 = arith.constant 0 : index
    %10 = vector.load %arg9[%c0_15, %c0_16] : memref<128x128xbf16, #tpu.memory_space<vmem>>, vector<128x128xbf16>
    %c0_17 = arith.constant 0 : index
    %c0_18 = arith.constant 0 : index
    %11 = vector.load %arg10[%c0_17, %c0_18] : memref<1x128xf32, #tpu.memory_space<vmem>>, vector<1x128xf32>
    %c0_19 = arith.constant 0 : index
    %c0_20 = arith.constant 0 : index
    %12 = vector.load %arg11[%c0_19, %c0_20] : memref<1x128xf32, #tpu.memory_space<vmem>>, vector<1x128xf32>
    %c0_21 = arith.constant 0 : index
    %c0_22 = arith.constant 0 : index
    %13 = vector.load %arg12[%c0_21, %c0_22] : memref<1x128xf32, #tpu.memory_space<vmem>>, vector<1x128xf32>
    %c0_23 = arith.constant 0 : index
    %c0_24 = arith.constant 0 : index
    %14 = vector.load %arg13[%c0_23, %c0_24] : memref<128x128xbf16, #tpu.memory_space<vmem>>, vector<128x128xbf16>
    %c0_25 = arith.constant 0 : index
    %c0_26 = arith.constant 0 : index
    %15 = vector.load %arg14[%c0_25, %c0_26] : memref<1x128xf32, #tpu.memory_space<vmem>>, vector<1x128xf32>
    %cst_27 = arith.constant dense<0.000000e+00> : vector<48xf32>
    %16 = vector.multi_reduction <add>, %4, %cst_27 [1] : vector<48x128xf32> to vector<48xf32>
    %17 = vector.shape_cast %16 : vector<48xf32> to vector<48x1xf32>
    %cst_28 = arith.constant 1.280000e+02 : f32
    %18 = vector.broadcast %cst_28 : f32 to vector<48x1xf32>
    %19 = arith.divf %17, %18 : vector<48x1xf32>
    %20 = vector.broadcast %19 : vector<48x1xf32> to vector<48x128xf32>
    %21 = arith.subf %4, %20 : vector<48x128xf32>
    %22 = arith.mulf %21, %21 : vector<48x128xf32>
    %cst_29 = arith.constant dense<0.000000e+00> : vector<48xf32>
    %23 = vector.multi_reduction <add>, %22, %cst_29 [1] : vector<48x128xf32> to vector<48xf32>
    %24 = vector.shape_cast %23 : vector<48xf32> to vector<48x1xf32>
    %cst_30 = arith.constant 1.280000e+02 : f32
    %25 = vector.broadcast %cst_30 : f32 to vector<48x1xf32>
    %26 = arith.divf %24, %25 : vector<48x1xf32>
    %cst_31 = arith.constant 9.99999974E-6 : f32
    %27 = vector.broadcast %cst_31 : f32 to vector<48x1xf32>
    %28 = arith.addf %26, %27 : vector<48x1xf32>
    %29 = math.rsqrt %28 : vector<48x1xf32>
    %30 = vector.broadcast %29 : vector<48x1xf32> to vector<48x128xf32>
    %31 = arith.mulf %21, %30 : vector<48x128xf32>
    %32 = vector.broadcast %6 : vector<1x128xf32> to vector<48x128xf32>
    %33 = arith.mulf %31, %32 : vector<48x128xf32>
    %34 = vector.broadcast %7 : vector<1x128xf32> to vector<48x128xf32>
    %35 = arith.addf %33, %34 : vector<48x128xf32>
    %36 = arith.truncf %35 : vector<48x128xf32> to vector<48x128xbf16>
    %cst_32 = arith.constant dense<0.000000e+00> : vector<48x384xf32>
    %37 = tpu.matmul %36, %8, %cst_32 {dimension_numbers = #tpu.dot_dimension_numbers<[1], [0], [0], [1], [0, 0, 1, 1], [], []>} : vector<48x128xbf16>, vector<128x384xbf16>, vector<48x384xf32> -> vector<48x384xf32>
    %38 = vector.broadcast %9 : vector<1x384xf32> to vector<48x384xf32>
    %39 = arith.addf %37, %38 : vector<48x384xf32>
    %40 = vector.extract_strided_slice %39 {offsets = [0, 0], sizes = [48, 128], strides = [1, 1]} : vector<48x384xf32> to vector<48x128xf32>
    %41 = vector.extract_strided_slice %39 {offsets = [0, 128], sizes = [48, 128], strides = [1, 1]} : vector<48x384xf32> to vector<48x128xf32>
    %42 = vector.extract_strided_slice %39 {offsets = [0, 256], sizes = [48, 128], strides = [1, 1]} : vector<48x384xf32> to vector<48x128xf32>
    %43 = arith.mulf %40, %41 : vector<48x128xf32>
    %44 = arith.truncf %43 : vector<48x128xf32> to vector<48x128xbf16>
    %cst_33 = arith.constant dense<0.000000e+00> : vector<48x128xf32>
    %45 = tpu.matmul %44, %5, %cst_33 {dimension_numbers = #tpu.dot_dimension_numbers<[1], [0], [0], [1], [0, 0, 1, 1], [], []>} : vector<48x128xbf16>, vector<128x128xbf16>, vector<48x128xf32> -> vector<48x128xf32>
    %cst_34 = arith.constant 1.000000e+00 : f32
    %46 = vector.broadcast %cst_34 : f32 to vector<48x128xf32>
    %47 = vector.extract_strided_slice %41 {offsets = [24, 0], sizes = [24, 128], strides = [1, 1]} : vector<48x128xf32> to vector<24x128xf32>
    %48 = vector.extract_strided_slice %41 {offsets = [0, 0], sizes = [24, 128], strides = [1, 1]} : vector<48x128xf32> to vector<24x128xf32>
    %49 = tpu.concatenate %47, %48 in 0 : vector<24x128xf32>, vector<24x128xf32> -> vector<48x128xf32>
    %50 = vector.extract_strided_slice %42 {offsets = [24, 0], sizes = [24, 128], strides = [1, 1]} : vector<48x128xf32> to vector<24x128xf32>
    %51 = vector.extract_strided_slice %42 {offsets = [0, 0], sizes = [24, 128], strides = [1, 1]} : vector<48x128xf32> to vector<24x128xf32>
    %52 = tpu.concatenate %50, %51 in 0 : vector<24x128xf32>, vector<24x128xf32> -> vector<48x128xf32>
    %53 = arith.mulf %40, %49 : vector<48x128xf32>
    %54 = arith.truncf %53 : vector<48x128xf32> to vector<48x128xbf16>
    %cst_35 = arith.constant dense<0.000000e+00> : vector<48x128xf32>
    %55 = tpu.matmul %54, %5, %cst_35 {dimension_numbers = #tpu.dot_dimension_numbers<[1], [0], [0], [1], [0, 0, 1, 1], [], []>} : vector<48x128xbf16>, vector<128x128xbf16>, vector<48x128xf32> -> vector<48x128xf32>
    %56 = arith.maximumf %45, %55 : vector<48x128xf32>
    %57 = arith.subf %45, %56 : vector<48x128xf32>
    %58 = math.exp %57 : vector<48x128xf32>
    %59 = arith.subf %55, %56 : vector<48x128xf32>
    %60 = math.exp %59 : vector<48x128xf32>
    %61 = arith.mulf %58, %42 : vector<48x128xf32>
    %62 = arith.mulf %60, %52 : vector<48x128xf32>
    %63 = arith.addf %61, %62 : vector<48x128xf32>
    %64 = arith.mulf %58, %46 : vector<48x128xf32>
    %65 = arith.addf %64, %60 : vector<48x128xf32>
    %66 = tpu.reciprocal %65 {approx = true} : vector<48x128xf32> -> vector<48x128xf32>
    %67 = arith.mulf %63, %66 : vector<48x128xf32>
    %68 = arith.truncf %67 : vector<48x128xf32> to vector<48x128xbf16>
    %cst_36 = arith.constant dense<0.000000e+00> : vector<48x128xf32>
    %69 = tpu.matmul %68, %10, %cst_36 {dimension_numbers = #tpu.dot_dimension_numbers<[1], [0], [0], [1], [0, 0, 1, 1], [], []>} : vector<48x128xbf16>, vector<128x128xbf16>, vector<48x128xf32> -> vector<48x128xf32>
    %70 = arith.addf %4, %69 : vector<48x128xf32>
    %71 = vector.broadcast %11 : vector<1x128xf32> to vector<48x128xf32>
    %72 = arith.addf %70, %71 : vector<48x128xf32>
    %cst_37 = arith.constant dense<0.000000e+00> : vector<48xf32>
    %73 = vector.multi_reduction <add>, %72, %cst_37 [1] : vector<48x128xf32> to vector<48xf32>
    %74 = vector.shape_cast %73 : vector<48xf32> to vector<48x1xf32>
    %cst_38 = arith.constant 1.280000e+02 : f32
    %75 = vector.broadcast %cst_38 : f32 to vector<48x1xf32>
    %76 = arith.divf %74, %75 : vector<48x1xf32>
    %77 = vector.broadcast %76 : vector<48x1xf32> to vector<48x128xf32>
    %78 = arith.subf %72, %77 : vector<48x128xf32>
    %79 = arith.mulf %78, %78 : vector<48x128xf32>
    %cst_39 = arith.constant dense<0.000000e+00> : vector<48xf32>
    %80 = vector.multi_reduction <add>, %79, %cst_39 [1] : vector<48x128xf32> to vector<48xf32>
    %81 = vector.shape_cast %80 : vector<48xf32> to vector<48x1xf32>
    %cst_40 = arith.constant 1.280000e+02 : f32
    %82 = vector.broadcast %cst_40 : f32 to vector<48x1xf32>
    %83 = arith.divf %81, %82 : vector<48x1xf32>
    %cst_41 = arith.constant 9.99999974E-6 : f32
    %84 = vector.broadcast %cst_41 : f32 to vector<48x1xf32>
    %85 = arith.addf %83, %84 : vector<48x1xf32>
    %86 = math.rsqrt %85 : vector<48x1xf32>
    %87 = vector.broadcast %86 : vector<48x1xf32> to vector<48x128xf32>
    %88 = arith.mulf %78, %87 : vector<48x128xf32>
    %89 = vector.broadcast %12 : vector<1x128xf32> to vector<48x128xf32>
    %90 = arith.mulf %88, %89 : vector<48x128xf32>
    %91 = vector.broadcast %13 : vector<1x128xf32> to vector<48x128xf32>
    %92 = arith.addf %90, %91 : vector<48x128xf32>
    %93 = arith.truncf %92 : vector<48x128xf32> to vector<48x128xbf16>
    %cst_42 = arith.constant dense<0.000000e+00> : vector<48x128xf32>
    %94 = tpu.matmul %93, %14, %cst_42 {dimension_numbers = #tpu.dot_dimension_numbers<[1], [0], [0], [1], [0, 0, 1, 1], [], []>} : vector<48x128xbf16>, vector<128x128xbf16>, vector<48x128xf32> -> vector<48x128xf32>
    %95 = vector.broadcast %15 : vector<1x128xf32> to vector<48x128xf32>
    %96 = arith.addf %94, %95 : vector<48x128xf32>
    %cst_43 = arith.constant 5.000000e-01 : f32
    %97 = vector.broadcast %cst_43 : f32 to vector<48x128xf32>
    %98 = arith.mulf %97, %96 : vector<48x128xf32>
    %cst_44 = arith.constant 0.707106769 : f32
    %99 = vector.broadcast %cst_44 : f32 to vector<48x128xf32>
    %100 = arith.mulf %96, %99 : vector<48x128xf32>
    %cst_45 = arith.constant 0.000000e+00 : f32
    %101 = vector.broadcast %cst_45 : f32 to vector<48x128xf32>
    %102 = arith.cmpf oge, %100, %101 : vector<48x128xf32>
    %cst_46 = arith.constant 1.000000e+00 : f32
    %cst_47 = arith.constant -1.000000e+00 : f32
    %103 = vector.broadcast %cst_46 : f32 to vector<48x128xf32>
    %104 = vector.broadcast %cst_47 : f32 to vector<48x128xf32>
    %105 = arith.select %102, %103, %104 : vector<48x128xi1>, vector<48x128xf32>
    %106 = math.absf %100 : vector<48x128xf32>
    %cst_48 = arith.constant 0.327591091 : f32
    %107 = vector.broadcast %cst_48 : f32 to vector<48x128xf32>
    %108 = arith.mulf %107, %106 : vector<48x128xf32>
    %cst_49 = arith.constant 1.000000e+00 : f32
    %109 = vector.broadcast %cst_49 : f32 to vector<48x128xf32>
    %110 = arith.addf %109, %108 : vector<48x128xf32>
    %cst_50 = arith.constant 1.000000e+00 : f32
    %111 = vector.broadcast %cst_50 : f32 to vector<48x128xf32>
    %112 = arith.divf %111, %110 : vector<48x128xf32>
    %cst_51 = arith.constant 1.06140542 : f32
    %113 = vector.broadcast %cst_51 : f32 to vector<48x128xf32>
    %114 = arith.mulf %113, %112 : vector<48x128xf32>
    %cst_52 = arith.constant -1.45315206 : f32
    %115 = vector.broadcast %cst_52 : f32 to vector<48x128xf32>
    %116 = arith.addf %114, %115 : vector<48x128xf32>
    %117 = arith.mulf %116, %112 : vector<48x128xf32>
    %cst_53 = arith.constant 1.42141378 : f32
    %118 = vector.broadcast %cst_53 : f32 to vector<48x128xf32>
    %119 = arith.addf %117, %118 : vector<48x128xf32>
    %120 = arith.mulf %119, %112 : vector<48x128xf32>
    %cst_54 = arith.constant -0.284496725 : f32
    %121 = vector.broadcast %cst_54 : f32 to vector<48x128xf32>
    %122 = arith.addf %120, %121 : vector<48x128xf32>
    %123 = arith.mulf %122, %112 : vector<48x128xf32>
    %cst_55 = arith.constant 0.254829586 : f32
    %124 = vector.broadcast %cst_55 : f32 to vector<48x128xf32>
    %125 = arith.addf %123, %124 : vector<48x128xf32>
    %126 = arith.mulf %125, %112 : vector<48x128xf32>
    %cst_56 = arith.constant 0.000000e+00 : f32
    %127 = vector.broadcast %cst_56 : f32 to vector<48x128xf32>
    %128 = arith.subf %127, %106 : vector<48x128xf32>
    %129 = arith.mulf %128, %106 : vector<48x128xf32>
    %130 = math.exp %129 : vector<48x128xf32>
    %131 = arith.mulf %126, %130 : vector<48x128xf32>
    %cst_57 = arith.constant 1.000000e+00 : f32
    %132 = vector.broadcast %cst_57 : f32 to vector<48x128xf32>
    %133 = arith.subf %132, %131 : vector<48x128xf32>
    %134 = arith.mulf %105, %133 : vector<48x128xf32>
    %cst_58 = arith.constant 1.000000e+00 : f32
    %135 = vector.broadcast %cst_58 : f32 to vector<48x128xf32>
    %136 = arith.addf %135, %134 : vector<48x128xf32>
    %137 = arith.mulf %98, %136 : vector<48x128xf32>
    %138 = arith.addf %72, %137 : vector<48x128xf32>
    %cst_59 = arith.constant dense<0.000000e+00> : vector<48xf32>
    %139 = vector.multi_reduction <add>, %138, %cst_59 [1] : vector<48x128xf32> to vector<48xf32>
    %140 = vector.shape_cast %139 : vector<48xf32> to vector<48x1xf32>
    %cst_60 = arith.constant 1.280000e+02 : f32
    %141 = vector.broadcast %cst_60 : f32 to vector<48x1xf32>
    %142 = arith.divf %140, %141 : vector<48x1xf32>
    %143 = vector.broadcast %142 : vector<48x1xf32> to vector<48x128xf32>
    %144 = arith.subf %138, %143 : vector<48x128xf32>
    %145 = arith.mulf %144, %144 : vector<48x128xf32>
    %cst_61 = arith.constant dense<0.000000e+00> : vector<48xf32>
    %146 = vector.multi_reduction <add>, %145, %cst_61 [1] : vector<48x128xf32> to vector<48xf32>
    %147 = vector.shape_cast %146 : vector<48xf32> to vector<48x1xf32>
    %cst_62 = arith.constant 1.280000e+02 : f32
    %148 = vector.broadcast %cst_62 : f32 to vector<48x1xf32>
    %149 = arith.divf %147, %148 : vector<48x1xf32>
    %cst_63 = arith.constant 9.99999974E-6 : f32
    %150 = vector.broadcast %cst_63 : f32 to vector<48x1xf32>
    %151 = arith.addf %149, %150 : vector<48x1xf32>
    %152 = math.rsqrt %151 : vector<48x1xf32>
    %153 = vector.broadcast %152 : vector<48x1xf32> to vector<48x128xf32>
    %154 = arith.mulf %144, %153 : vector<48x128xf32>
    %155 = vector.broadcast %6 : vector<1x128xf32> to vector<48x128xf32>
    %156 = arith.mulf %154, %155 : vector<48x128xf32>
    %157 = vector.broadcast %7 : vector<1x128xf32> to vector<48x128xf32>
    %158 = arith.addf %156, %157 : vector<48x128xf32>
    %159 = arith.truncf %158 : vector<48x128xf32> to vector<48x128xbf16>
    %cst_64 = arith.constant dense<0.000000e+00> : vector<48x384xf32>
    %160 = tpu.matmul %159, %8, %cst_64 {dimension_numbers = #tpu.dot_dimension_numbers<[1], [0], [0], [1], [0, 0, 1, 1], [], []>} : vector<48x128xbf16>, vector<128x384xbf16>, vector<48x384xf32> -> vector<48x384xf32>
    %161 = vector.broadcast %9 : vector<1x384xf32> to vector<48x384xf32>
    %162 = arith.addf %160, %161 : vector<48x384xf32>
    %163 = vector.extract_strided_slice %162 {offsets = [0, 0], sizes = [48, 128], strides = [1, 1]} : vector<48x384xf32> to vector<48x128xf32>
    %164 = vector.extract_strided_slice %162 {offsets = [0, 128], sizes = [48, 128], strides = [1, 1]} : vector<48x384xf32> to vector<48x128xf32>
    %165 = vector.extract_strided_slice %162 {offsets = [0, 256], sizes = [48, 128], strides = [1, 1]} : vector<48x384xf32> to vector<48x128xf32>
    %166 = arith.mulf %163, %164 : vector<48x128xf32>
    %167 = arith.truncf %166 : vector<48x128xf32> to vector<48x128xbf16>
    %cst_65 = arith.constant dense<0.000000e+00> : vector<48x128xf32>
    %168 = tpu.matmul %167, %5, %cst_65 {dimension_numbers = #tpu.dot_dimension_numbers<[1], [0], [0], [1], [0, 0, 1, 1], [], []>} : vector<48x128xbf16>, vector<128x128xbf16>, vector<48x128xf32> -> vector<48x128xf32>
    %cst_66 = arith.constant 1.000000e+00 : f32
    %169 = vector.broadcast %cst_66 : f32 to vector<48x128xf32>
    %170 = vector.extract_strided_slice %164 {offsets = [24, 0], sizes = [24, 128], strides = [1, 1]} : vector<48x128xf32> to vector<24x128xf32>
    %171 = vector.extract_strided_slice %164 {offsets = [0, 0], sizes = [24, 128], strides = [1, 1]} : vector<48x128xf32> to vector<24x128xf32>
    %172 = tpu.concatenate %170, %171 in 0 : vector<24x128xf32>, vector<24x128xf32> -> vector<48x128xf32>
    %173 = vector.extract_strided_slice %165 {offsets = [24, 0], sizes = [24, 128], strides = [1, 1]} : vector<48x128xf32> to vector<24x128xf32>
    %174 = vector.extract_strided_slice %165 {offsets = [0, 0], sizes = [24, 128], strides = [1, 1]} : vector<48x128xf32> to vector<24x128xf32>
    %175 = tpu.concatenate %173, %174 in 0 : vector<24x128xf32>, vector<24x128xf32> -> vector<48x128xf32>
    %176 = arith.mulf %163, %172 : vector<48x128xf32>
    %177 = arith.truncf %176 : vector<48x128xf32> to vector<48x128xbf16>
    %cst_67 = arith.constant dense<0.000000e+00> : vector<48x128xf32>
    %178 = tpu.matmul %177, %5, %cst_67 {dimension_numbers = #tpu.dot_dimension_numbers<[1], [0], [0], [1], [0, 0, 1, 1], [], []>} : vector<48x128xbf16>, vector<128x128xbf16>, vector<48x128xf32> -> vector<48x128xf32>
    %179 = arith.maximumf %168, %178 : vector<48x128xf32>
    %180 = arith.subf %168, %179 : vector<48x128xf32>
    %181 = math.exp %180 : vector<48x128xf32>
    %182 = arith.subf %178, %179 : vector<48x128xf32>
    %183 = math.exp %182 : vector<48x128xf32>
    %184 = arith.mulf %181, %165 : vector<48x128xf32>
    %185 = arith.mulf %183, %175 : vector<48x128xf32>
    %186 = arith.addf %184, %185 : vector<48x128xf32>
    %187 = arith.mulf %181, %169 : vector<48x128xf32>
    %188 = arith.addf %187, %183 : vector<48x128xf32>
    %189 = tpu.reciprocal %188 {approx = true} : vector<48x128xf32> -> vector<48x128xf32>
    %190 = arith.mulf %186, %189 : vector<48x128xf32>
    %191 = arith.truncf %190 : vector<48x128xf32> to vector<48x128xbf16>
    %cst_68 = arith.constant dense<0.000000e+00> : vector<48x128xf32>
    %192 = tpu.matmul %191, %10, %cst_68 {dimension_numbers = #tpu.dot_dimension_numbers<[1], [0], [0], [1], [0, 0, 1, 1], [], []>} : vector<48x128xbf16>, vector<128x128xbf16>, vector<48x128xf32> -> vector<48x128xf32>
    %193 = arith.addf %138, %192 : vector<48x128xf32>
    %194 = vector.broadcast %11 : vector<1x128xf32> to vector<48x128xf32>
    %195 = arith.addf %193, %194 : vector<48x128xf32>
    %cst_69 = arith.constant dense<0.000000e+00> : vector<48xf32>
    %196 = vector.multi_reduction <add>, %195, %cst_69 [1] : vector<48x128xf32> to vector<48xf32>
    %197 = vector.shape_cast %196 : vector<48xf32> to vector<48x1xf32>
    %cst_70 = arith.constant 1.280000e+02 : f32
    %198 = vector.broadcast %cst_70 : f32 to vector<48x1xf32>
    %199 = arith.divf %197, %198 : vector<48x1xf32>
    %200 = vector.broadcast %199 : vector<48x1xf32> to vector<48x128xf32>
    %201 = arith.subf %195, %200 : vector<48x128xf32>
    %202 = arith.mulf %201, %201 : vector<48x128xf32>
    %cst_71 = arith.constant dense<0.000000e+00> : vector<48xf32>
    %203 = vector.multi_reduction <add>, %202, %cst_71 [1] : vector<48x128xf32> to vector<48xf32>
    %204 = vector.shape_cast %203 : vector<48xf32> to vector<48x1xf32>
    %cst_72 = arith.constant 1.280000e+02 : f32
    %205 = vector.broadcast %cst_72 : f32 to vector<48x1xf32>
    %206 = arith.divf %204, %205 : vector<48x1xf32>
    %cst_73 = arith.constant 9.99999974E-6 : f32
    %207 = vector.broadcast %cst_73 : f32 to vector<48x1xf32>
    %208 = arith.addf %206, %207 : vector<48x1xf32>
    %209 = math.rsqrt %208 : vector<48x1xf32>
    %210 = vector.broadcast %209 : vector<48x1xf32> to vector<48x128xf32>
    %211 = arith.mulf %201, %210 : vector<48x128xf32>
    %212 = vector.broadcast %12 : vector<1x128xf32> to vector<48x128xf32>
    %213 = arith.mulf %211, %212 : vector<48x128xf32>
    %214 = vector.broadcast %13 : vector<1x128xf32> to vector<48x128xf32>
    %215 = arith.addf %213, %214 : vector<48x128xf32>
    %216 = arith.truncf %215 : vector<48x128xf32> to vector<48x128xbf16>
    %cst_74 = arith.constant dense<0.000000e+00> : vector<48x128xf32>
    %217 = tpu.matmul %216, %14, %cst_74 {dimension_numbers = #tpu.dot_dimension_numbers<[1], [0], [0], [1], [0, 0, 1, 1], [], []>} : vector<48x128xbf16>, vector<128x128xbf16>, vector<48x128xf32> -> vector<48x128xf32>
    %218 = vector.broadcast %15 : vector<1x128xf32> to vector<48x128xf32>
    %219 = arith.addf %217, %218 : vector<48x128xf32>
    %cst_75 = arith.constant 5.000000e-01 : f32
    %220 = vector.broadcast %cst_75 : f32 to vector<48x128xf32>
    %221 = arith.mulf %220, %219 : vector<48x128xf32>
    %cst_76 = arith.constant 0.707106769 : f32
    %222 = vector.broadcast %cst_76 : f32 to vector<48x128xf32>
    %223 = arith.mulf %219, %222 : vector<48x128xf32>
    %cst_77 = arith.constant 0.000000e+00 : f32
    %224 = vector.broadcast %cst_77 : f32 to vector<48x128xf32>
    %225 = arith.cmpf oge, %223, %224 : vector<48x128xf32>
    %cst_78 = arith.constant 1.000000e+00 : f32
    %cst_79 = arith.constant -1.000000e+00 : f32
    %226 = vector.broadcast %cst_78 : f32 to vector<48x128xf32>
    %227 = vector.broadcast %cst_79 : f32 to vector<48x128xf32>
    %228 = arith.select %225, %226, %227 : vector<48x128xi1>, vector<48x128xf32>
    %229 = math.absf %223 : vector<48x128xf32>
    %cst_80 = arith.constant 0.327591091 : f32
    %230 = vector.broadcast %cst_80 : f32 to vector<48x128xf32>
    %231 = arith.mulf %230, %229 : vector<48x128xf32>
    %cst_81 = arith.constant 1.000000e+00 : f32
    %232 = vector.broadcast %cst_81 : f32 to vector<48x128xf32>
    %233 = arith.addf %232, %231 : vector<48x128xf32>
    %cst_82 = arith.constant 1.000000e+00 : f32
    %234 = vector.broadcast %cst_82 : f32 to vector<48x128xf32>
    %235 = arith.divf %234, %233 : vector<48x128xf32>
    %cst_83 = arith.constant 1.06140542 : f32
    %236 = vector.broadcast %cst_83 : f32 to vector<48x128xf32>
    %237 = arith.mulf %236, %235 : vector<48x128xf32>
    %cst_84 = arith.constant -1.45315206 : f32
    %238 = vector.broadcast %cst_84 : f32 to vector<48x128xf32>
    %239 = arith.addf %237, %238 : vector<48x128xf32>
    %240 = arith.mulf %239, %235 : vector<48x128xf32>
    %cst_85 = arith.constant 1.42141378 : f32
    %241 = vector.broadcast %cst_85 : f32 to vector<48x128xf32>
    %242 = arith.addf %240, %241 : vector<48x128xf32>
    %243 = arith.mulf %242, %235 : vector<48x128xf32>
    %cst_86 = arith.constant -0.284496725 : f32
    %244 = vector.broadcast %cst_86 : f32 to vector<48x128xf32>
    %245 = arith.addf %243, %244 : vector<48x128xf32>
    %246 = arith.mulf %245, %235 : vector<48x128xf32>
    %cst_87 = arith.constant 0.254829586 : f32
    %247 = vector.broadcast %cst_87 : f32 to vector<48x128xf32>
    %248 = arith.addf %246, %247 : vector<48x128xf32>
    %249 = arith.mulf %248, %235 : vector<48x128xf32>
    %cst_88 = arith.constant 0.000000e+00 : f32
    %250 = vector.broadcast %cst_88 : f32 to vector<48x128xf32>
    %251 = arith.subf %250, %229 : vector<48x128xf32>
    %252 = arith.mulf %251, %229 : vector<48x128xf32>
    %253 = math.exp %252 : vector<48x128xf32>
    %254 = arith.mulf %249, %253 : vector<48x128xf32>
    %cst_89 = arith.constant 1.000000e+00 : f32
    %255 = vector.broadcast %cst_89 : f32 to vector<48x128xf32>
    %256 = arith.subf %255, %254 : vector<48x128xf32>
    %257 = arith.mulf %228, %256 : vector<48x128xf32>
    %cst_90 = arith.constant 1.000000e+00 : f32
    %258 = vector.broadcast %cst_90 : f32 to vector<48x128xf32>
    %259 = arith.addf %258, %257 : vector<48x128xf32>
    %260 = arith.mulf %221, %259 : vector<48x128xf32>
    %261 = arith.addf %195, %260 : vector<48x128xf32>
    %c0_91 = arith.constant 0 : index
    %c0_92 = arith.constant 0 : index
    %262 = vector.load %arg15[%c0_91, %c0_92] : memref<48x128xf32, #tpu.memory_space<vmem>>, vector<48x128xf32>
    tpu.vector_store %arg15[%c0_91, %c0_92], %261 {strides = array<i32>} : memref<48x128xf32, #tpu.memory_space<vmem>>, vector<48x128xf32>,
    return
  }
  func.func @transform_0(%arg0: i32) -> (i32, i32) {
    %c0_i32 = arith.constant 0 : i32
    %c0_i32_0 = arith.constant 0 : i32
    %c0_i32_1 = arith.constant 0 : i32
    return %c0_i32, %c0_i32_0 : i32, i32
  }
  func.func @transform_1(%arg0: i32) -> (i32, i32) {
    %c0_i32 = arith.constant 0 : i32
    %c0_i32_0 = arith.constant 0 : i32
    %c0_i32_1 = arith.constant 0 : i32
    return %c0_i32, %c0_i32_0 : i32, i32
  }
  func.func @transform_2(%arg0: i32) -> (i32, i32) {
    %c0_i32 = arith.constant 0 : i32
    %c0_i32_0 = arith.constant 0 : i32
    %c0_i32_1 = arith.constant 0 : i32
    return %c0_i32, %c0_i32_0 : i32, i32
  }
  func.func @transform_3(%arg0: i32) -> (i32, i32) {
    %c0_i32 = arith.constant 0 : i32
    %c0_i32_0 = arith.constant 0 : i32
    %c0_i32_1 = arith.constant 0 : i32
    return %c0_i32, %c0_i32_0 : i32, i32
  }
  func.func @transform_4(%arg0: i32) -> (i32, i32) {
    %c0_i32 = arith.constant 0 : i32
    %c0_i32_0 = arith.constant 0 : i32
    %c0_i32_1 = arith.constant 0 : i32
    return %c0_i32, %c0_i32_0 : i32, i32
  }
  func.func @transform_5(%arg0: i32) -> (i32, i32) {
    %c0_i32 = arith.constant 0 : i32
    %c0_i32_0 = arith.constant 0 : i32
    %c0_i32_1 = arith.constant 0 : i32
    return %c0_i32, %c0_i32_0 : i32, i32
  }
  func.func @transform_6(%arg0: i32) -> (i32, i32) {
    %c0_i32 = arith.constant 0 : i32
    %c0_i32_0 = arith.constant 0 : i32
    %c0_i32_1 = arith.constant 0 : i32
    return %c0_i32, %c0_i32_0 : i32, i32
  }
  func.func @transform_7(%arg0: i32) -> (i32, i32) {
    %c0_i32 = arith.constant 0 : i32
    %c0_i32_0 = arith.constant 0 : i32
    %c0_i32_1 = arith.constant 0 : i32
    return %c0_i32, %c0_i32_0 : i32, i32
  }
  func.func @transform_8(%arg0: i32) -> (i32, i32) {
    %c0_i32 = arith.constant 0 : i32
    %c0_i32_0 = arith.constant 0 : i32
    %c0_i32_1 = arith.constant 0 : i32
    return %c0_i32, %c0_i32_0 : i32, i32
  }
  func.func @transform_9(%arg0: i32) -> (i32, i32) {
    %c0_i32 = arith.constant 0 : i32
    %c0_i32_0 = arith.constant 0 : i32
    %c0_i32_1 = arith.constant 0 : i32
    return %c0_i32, %c0_i32_0 : i32, i32
  }
  func.func @transform_10(%arg0: i32) -> (i32, i32) {
    %c0_i32 = arith.constant 0 : i32
    %c0_i32_0 = arith.constant 0 : i32
    %c0_i32_1 = arith.constant 0 : i32
    return %c0_i32, %c0_i32_0 : i32, i32
  }
  func.func @transform_11(%arg0: i32) -> (i32, i32) {
    %c0_i32 = arith.constant 0 : i32
    %c0_i32_0 = arith.constant 0 : i32
    %c0_i32_1 = arith.constant 0 : i32
    return %c0_i32, %c0_i32_0 : i32, i32
  }
  func.func @transform_12(%arg0: i32) -> (i32, i32) {
    %c0_i32 = arith.constant 0 : i32
    %c0_i32_0 = arith.constant 0 : i32
    %c0_i32_1 = arith.constant 0 : i32
    return %c0_i32, %c0_i32_0 : i32, i32
  }
  func.func @transform_13(%arg0: i32) -> (i32, i32) {
    %c0_i32 = arith.constant 0 : i32
    %c0_i32_0 = arith.constant 0 : i32
    %c0_i32_1 = arith.constant 0 : i32
    return %c0_i32, %c0_i32_0 : i32, i32
  }
  func.func @transform_14(%arg0: i32) -> (i32, i32) {
    %c0_i32 = arith.constant 0 : i32
    %c0_i32_0 = arith.constant 0 : i32
    %c0_i32_1 = arith.constant 0 : i32
    return %c0_i32, %c0_i32_0 : i32, i32
  }
}

</mosaic_0001>

<llo_original>
// kernel: vision_transformer_forward.1
$region0: #{vision_transformer_forward.1}
  #allocation0 [shape = 'u32[]', space=smem, size = 0x4, offset = 0x4, fixed_abs, tag = 'smem constant byte address 0x4 - core index']
  #allocation1 [shape = 'u32[144,128]{1,0:T(1,128)}', space=vmem, size = 0x12000, scoped, tag = 'internal scratch']
  %s0 = inlined_call_operand.vmem [shape: bf16[48,128], index: 0, kind: input, shape index: {}]
  %s1 = inlined_call_operand.vmem [shape: bf16[128,128], index: 1, kind: input, shape index: {}]
  %s2 = inlined_call_operand.vmem [shape: f32[48,128], index: 2, kind: input, shape index: {}]
  %s3 = inlined_call_operand.vmem [shape: bf16[128,128], index: 3, kind: input, shape index: {}]
  %s4 = inlined_call_operand.vmem [shape: f32[1,128], index: 4, kind: input, shape index: {}]
  %s5 = inlined_call_operand.vmem [shape: f32[1,128], index: 5, kind: input, shape index: {}]
  %s6 = inlined_call_operand.vmem [shape: bf16[128,384], index: 6, kind: input, shape index: {}]
  %s7 = inlined_call_operand.vmem [shape: f32[1,384], index: 7, kind: input, shape index: {}]
  %s8 = inlined_call_operand.vmem [shape: bf16[128,128], index: 8, kind: input, shape index: {}]
  %s9 = inlined_call_operand.vmem [shape: f32[1,128], index: 9, kind: input, shape index: {}]
  %s10 = inlined_call_operand.vmem [shape: f32[1,128], index: 10, kind: input, shape index: {}]
  %s11 = inlined_call_operand.vmem [shape: f32[1,128], index: 11, kind: input, shape index: {}]
  %s12 = inlined_call_operand.vmem [shape: bf16[128,128], index: 12, kind: input, shape index: {}]
  %s13 = inlined_call_operand.vmem [shape: f32[1,128], index: 13, kind: input, shape index: {}]
  %s14 = inlined_call_operand.vmem [shape: f32[48,128], index: 14, kind: output, shape index: {}]
  %s15 = sld [smem:[#allocation0]]
  $region66: #{vision_transformer_forward.1} parent=0
    _
  %s17 = ssub.s32 1, %s15
  %s18 = scalar_select 0, %s17, %s15
  // Predicated region
  $region2: #{vision_transformer_forward.1} parent=0 // pred_check
    _
  $region3: #{vision_transformer_forward.1} parent=0 // pred_check_branch
    %20 = sbr.rel (0) target = $region5
  $region4: #{vision_transformer_forward.1} parent=0 // pred_region
    _
  $region5: #{vision_transformer_forward.1} parent=0 // pred_fallthru
    _
  // Predicated region
  $region6: #{vision_transformer_forward.1} parent=0 // pred_check
    _
  $region7: #{vision_transformer_forward.1} parent=0 // pred_check_branch
    %22 = sbr.rel (0) target = $region9
  $region8: #{vision_transformer_forward.1} parent=0 // pred_region
    _
  $region9: #{vision_transformer_forward.1} parent=0 // pred_fallthru
    _
  // Predicated region
  $region10: #{vision_transformer_forward.1} parent=0 // pred_check
    _
  $region11: #{vision_transformer_forward.1} parent=0 // pred_check_branch
    %24 = sbr.rel (0) target = $region13
  $region12: #{vision_transformer_forward.1} parent=0 // pred_region
    _
  $region13: #{vision_transformer_forward.1} parent=0 // pred_fallthru
    _
  // Predicated region
  $region14: #{vision_transformer_forward.1} parent=0 // pred_check
    _
  $region15: #{vision_transformer_forward.1} parent=0 // pred_check_branch
    %26 = sbr.rel (0) target = $region17
  $region16: #{vision_transformer_forward.1} parent=0 // pred_region
    _
  $region17: #{vision_transformer_forward.1} parent=0 // pred_fallthru
    _
  // Predicated region
  $region18: #{vision_transformer_forward.1} parent=0 // pred_check
    _
  $region19: #{vision_transformer_forward.1} parent=0 // pred_check_branch
    %28 = sbr.rel (0) target = $region21
  $region20: #{vision_transformer_forward.1} parent=0 // pred_region
    _
  $region21: #{vision_transformer_forward.1} parent=0 // pred_fallthru
    _
  // Predicated region
  $region22: #{vision_transformer_forward.1} parent=0 // pred_check
    _
  $region23: #{vision_transformer_forward.1} parent=0 // pred_check_branch
    %30 = sbr.rel (0) target = $region25
  $region24: #{vision_transformer_forward.1} parent=0 // pred_region
    _
  $region25: #{vision_transformer_forward.1} parent=0 // pred_fallthru
    _
  // Predicated region
  $region26: #{vision_transformer_forward.1} parent=0 // pred_check
    _
  $region27: #{vision_transformer_forward.1} parent=0 // pred_check_branch
    %32 = sbr.rel (0) target = $region29
  $region28: #{vision_transformer_forward.1} parent=0 // pred_region
    _
  $region29: #{vision_transformer_forward.1} parent=0 // pred_fallthru
    _
  // Predicated region
  $region30: #{vision_transformer_forward.1} parent=0 // pred_check
    _
  $region31: #{vision_transformer_forward.1} parent=0 // pred_check_branch
    %34 = sbr.rel (0) target = $region33
  $region32: #{vision_transformer_forward.1} parent=0 // pred_region
    _
  $region33: #{vision_transformer_forward.1} parent=0 // pred_fallthru
    _
  // Predicated region
  $region34: #{vision_transformer_forward.1} parent=0 // pred_check
    _
  $region35: #{vision_transformer_forward.1} parent=0 // pred_check_branch
    %36 = sbr.rel (0) target = $region37
  $region36: #{vision_transformer_forward.1} parent=0 // pred_region
    _
  $region37: #{vision_transformer_forward.1} parent=0 // pred_fallthru
    _
  // Predicated region
  $region38: #{vision_transformer_forward.1} parent=0 // pred_check
    _
  $region39: #{vision_transformer_forward.1} parent=0 // pred_check_branch
    %38 = sbr.rel (0) target = $region41
  $region40: #{vision_transformer_forward.1} parent=0 // pred_region
    _
  $region41: #{vision_transformer_forward.1} parent=0 // pred_fallthru
    _
  // Predicated region
  $region42: #{vision_transformer_forward.1} parent=0 // pred_check
    _
  $region43: #{vision_transformer_forward.1} parent=0 // pred_check_branch
    %40 = sbr.rel (0) target = $region45
  $region44: #{vision_transformer_forward.1} parent=0 // pred_region
    _
  $region45: #{vision_transformer_forward.1} parent=0 // pred_fallthru
    _
  // Predicated region
  $region46: #{vision_transformer_forward.1} parent=0 // pred_check
    _
  $region47: #{vision_transformer_forward.1} parent=0 // pred_check_branch
    %42 = sbr.rel (0) target = $region49
  $region48: #{vision_transformer_forward.1} parent=0 // pred_region
    _
  $region49: #{vision_transformer_forward.1} parent=0 // pred_fallthru
    _
  // Predicated region
  $region50: #{vision_transformer_forward.1} parent=0 // pred_check
    _
  $region51: #{vision_transformer_forward.1} parent=0 // pred_check_branch
    %44 = sbr.rel (0) target = $region53
  $region52: #{vision_transformer_forward.1} parent=0 // pred_region
    _
  $region53: #{vision_transformer_forward.1} parent=0 // pred_fallthru
    _
  // Predicated region
  $region54: #{vision_transformer_forward.1} parent=0 // pred_check
    _
  $region55: #{vision_transformer_forward.1} parent=0 // pred_check_branch
    %46 = sbr.rel (0) target = $region57
  $region56: #{vision_transformer_forward.1} parent=0 // pred_region
    _
  $region57: #{vision_transformer_forward.1} parent=0 // pred_fallthru
    _
  %v48 = vld [vmem:[%s0] sm:$0xf]
  %v49 = vld [vmem:[%s0 + $0x4] sm:$0xf]
  %v50 = vld [vmem:[%s0 + $0x8] sm:$0xf]
  %v51 = vld [vmem:[%s0 + $0xc] sm:$0xf]
  %v52 = vld [vmem:[%s0 + $0x10] sm:$0xf]
  %v53 = vld [vmem:[%s0 + $0x14] sm:$0xf]
  %v54 = vld [vmem:[%s1] sm:$0xf]
  %v55 = vld [vmem:[%s1 + $0x4] sm:$0xf]
  %v56 = vld [vmem:[%s1 + $0x8] sm:$0xf]
  %v57 = vld [vmem:[%s1 + $0xc] sm:$0xf]
  %v58 = vld [vmem:[%s1 + $0x10] sm:$0xf]
  %v59 = vld [vmem:[%s1 + $0x14] sm:$0xf]
  %v60 = vld [vmem:[%s1 + $0x18] sm:$0xf]
  %v61 = vld [vmem:[%s1 + $0x1c] sm:$0xf]
  %v62 = vld [vmem:[%s1 + $0x20] sm:$0xf]
  %v63 = vld [vmem:[%s1 + $0x24] sm:$0xf]
  %v64 = vld [vmem:[%s1 + $0x28] sm:$0xf]
  %v65 = vld [vmem:[%s1 + $0x2c] sm:$0xf]
  %v66 = vld [vmem:[%s1 + $0x30] sm:$0xf]
  %v67 = vld [vmem:[%s1 + $0x34] sm:$0xf]
  %v68 = vld [vmem:[%s1 + $0x38] sm:$0xf]
  %v69 = vld [vmem:[%s1 + $0x3c] sm:$0xf]
  %v70 = vld [vmem:[%s2] sm:$0xff]
  %v71 = vld [vmem:[%s2 + $0x8] sm:$0xff]
  %v72 = vld [vmem:[%s2 + $0x10] sm:$0xff]
  %v73 = vld [vmem:[%s2 + $0x18] sm:$0xff]
  %v74 = vld [vmem:[%s2 + $0x20] sm:$0xff]
  %v75 = vld [vmem:[%s2 + $0x28] sm:$0xff]
  %v82 = vunpack.c.l.b16 %v48
  %v83 = vunpack.c.l.b16 %v49
  %v84 = vunpack.c.l.b16 %v50
  %v85 = vunpack.c.l.b16 %v51
  %v86 = vunpack.c.l.b16 %v52
  %v87 = vunpack.c.l.b16 %v53
  %v88 = vpack.c.b16 %v83, %v82
  %v89 = vpack.c.b16 %v85, %v84
  %v90 = vpack.c.b16 %v87, %v86
  %v110 = vunpack.c.l.b16 %v54
  %v111 = vunpack.c.l.b16 %v55
  %v112 = vunpack.c.l.b16 %v56
  %v113 = vunpack.c.l.b16 %v57
  %v114 = vunpack.c.l.b16 %v58
  %v115 = vunpack.c.l.b16 %v59
  %v116 = vunpack.c.l.b16 %v60
  %v117 = vunpack.c.l.b16 %v61
  %v118 = vunpack.c.l.b16 %v62
  %v119 = vunpack.c.l.b16 %v63
  %v120 = vunpack.c.l.b16 %v64
  %v121 = vunpack.c.l.b16 %v65
  %v122 = vunpack.c.l.b16 %v66
  %v123 = vunpack.c.l.b16 %v67
  %v124 = vunpack.c.l.b16 %v68
  %v125 = vunpack.c.l.b16 %v69
  %v126 = vpack.c.b16 %v111, %v110
  %v127 = vpack.c.b16 %v113, %v112
  %v128 = vpack.c.b16 %v115, %v114
  %v129 = vpack.c.b16 %v117, %v116
  %v130 = vpack.c.b16 %v119, %v118
  %v131 = vpack.c.b16 %v121, %v120
  %v132 = vpack.c.b16 %v123, %v122
  %v133 = vpack.c.b16 %v125, %v124
  %142 = vmatprep.subr.bf16.mxu0 0
  %143 = vmatpush1.bf16.msra.mxu0 %v133
  %144 = vmatprep.subr.bf16.mxu0 0
  %145 = vmatpush1.bf16.msra.mxu0 %v132
  %146 = vmatprep.subr.bf16.mxu0 0
  %147 = vmatpush1.bf16.msra.mxu0 %v131
  %148 = vmatprep.subr.bf16.mxu0 0
  %149 = vmatpush1.bf16.msra.mxu0 %v130
  %150 = vmatprep.subr.bf16.mxu0 0
  %151 = vmatpush1.bf16.msra.mxu0 %v129
  %152 = vmatprep.subr.bf16.mxu0 0
  %153 = vmatpush1.bf16.msra.mxu0 %v128
  %154 = vmatprep.subr.bf16.mxu0 0
  %155 = vmatpush1.bf16.msra.mxu0 %v127
  %156 = vmatprep.subr.bf16.mxu0 0
  %157 = vmatpush1.bf16.msra.mxu0 %v126
  %158 = vmatprep.subr.bf16.mxu0 0
  %159 = vmatpush2.bf16.msra.mxu0 0
  %160 = vmatprep.subr.bf16.mxu0 0
  %161 = vmatpush2.bf16.msra.mxu0 0
  %162 = vmatprep.subr.bf16.mxu0 0
  %163 = vmatpush2.bf16.msra.mxu0 0
  %164 = vmatprep.subr.bf16.mxu0 0
  %165 = vmatpush2.bf16.msra.mxu0 0
  %166 = vmatprep.subr.bf16.mxu0 0
  %167 = vmatpush2.bf16.msra.mxu0 0
  %168 = vmatprep.subr.bf16.mxu0 0
  %169 = vmatpush2.bf16.msra.mxu0 0
  %170 = vmatprep.subr.bf16.mxu0 0
  %171 = vmatpush2.bf16.msra.mxu0 0
  %172 = vmatprep.subr.bf16.mxu0 0
  %173 = vmatpush2.bf16.msra.mxu0 0
  %174 = vmatprep.mubr.bf16.mxu0 0
  %175 = vmatmul.mubr.bf16.gmra.mxu0 %v88
  %v176 = vpop.f32.mrf.mxu0
  %v177 = vadd.f32 %v70, %v176
  %v178 = vpop.f32.mrf.mxu0
  %v179 = vpop.f32.mrf.mxu0
  %v180 = vadd.f32 %v71, %v179
  %v181 = vpop.f32.mrf.mxu0
  %182 = vmatprep.mubr.bf16.mxu0 0
  %183 = vmatmul.mubr.bf16.gmra.mxu0 %v89
  %v184 = vpop.f32.mrf.mxu0
  %v185 = vadd.f32 %v72, %v184
  %v186 = vpop.f32.mrf.mxu0
  %v187 = vpop.f32.mrf.mxu0
  %v188 = vadd.f32 %v73, %v187
  %v189 = vpop.f32.mrf.mxu0
  %190 = vmatprep.mubr.bf16.mxu0 0
  %191 = vmatmul.mubr.bf16.gmra.mxu0 %v90
  %v192 = vpop.f32.mrf.mxu0
  %v193 = vadd.f32 %v74, %v192
  %v194 = vpop.f32.mrf.mxu0
  %v195 = vpop.f32.mrf.mxu0
  %v196 = vadd.f32 %v75, %v195
  %v197 = vpop.f32.mrf.mxu0
  %198 = vdwg.mxu0
  %v199 = vld [vmem:[%s3] sm:$0xf]
  %v200 = vld [vmem:[%s3 + $0x4] sm:$0xf]
  %v201 = vld [vmem:[%s3 + $0x8] sm:$0xf]
  %v202 = vld [vmem:[%s3 + $0xc] sm:$0xf]
  %v203 = vld [vmem:[%s3 + $0x10] sm:$0xf]
  %v204 = vld [vmem:[%s3 + $0x14] sm:$0xf]
  %v205 = vld [vmem:[%s3 + $0x18] sm:$0xf]
  %v206 = vld [vmem:[%s3 + $0x1c] sm:$0xf]
  %v207 = vld [vmem:[%s3 + $0x20] sm:$0xf]
  %v208 = vld [vmem:[%s3 + $0x24] sm:$0xf]
  %v209 = vld [vmem:[%s3 + $0x28] sm:$0xf]
  %v210 = vld [vmem:[%s3 + $0x2c] sm:$0xf]
  %v211 = vld [vmem:[%s3 + $0x30] sm:$0xf]
  %v212 = vld [vmem:[%s3 + $0x34] sm:$0xf]
  %v213 = vld [vmem:[%s3 + $0x38] sm:$0xf]
  %v214 = vld [vmem:[%s3 + $0x3c] sm:$0xf]
  %v215 = vld [vmem:[%s4] sm:$0x1]
  %v216 = vld [vmem:[%s5] sm:$0x1]
  %v217 = vld [vmem:[%s6] sm:$0xff]
  %v218 = vld [vmem:[%s6 + $0x8] sm:$0xf]
  %v219 = vld [vmem:[%s6 + $0xc] sm:$0xff]
  %v220 = vld [vmem:[%s6 + $0x14] sm:$0xf]
  %v221 = vld [vmem:[%s6 + $0x18] sm:$0xff]
  %v222 = vld [vmem:[%s6 + $0x20] sm:$0xf]
  %v223 = vld [vmem:[%s6 + $0x24] sm:$0xff]
  %v224 = vld [vmem:[%s6 + $0x2c] sm:$0xf]
  %v225 = vld [vmem:[%s6 + $0x30] sm:$0xff]
  %v226 = vld [vmem:[%s6 + $0x38] sm:$0xf]
  %v227 = vld [vmem:[%s6 + $0x3c] sm:$0xff]
  %v228 = vld [vmem:[%s6 + $0x44] sm:$0xf]
  %v229 = vld [vmem:[%s6 + $0x48] sm:$0xff]
  %v230 = vld [vmem:[%s6 + $0x50] sm:$0xf]
  %v231 = vld [vmem:[%s6 + $0x54] sm:$0xff]
  %v232 = vld [vmem:[%s6 + $0x5c] sm:$0xf]
  %v233 = vld [vmem:[%s6 + $0x60] sm:$0xff]
  %v234 = vld [vmem:[%s6 + $0x68] sm:$0xf]
  %v235 = vld [vmem:[%s6 + $0x6c] sm:$0xff]
  %v236 = vld [vmem:[%s6 + $0x74] sm:$0xf]
  %v237 = vld [vmem:[%s6 + $0x78] sm:$0xff]
  %v238 = vld [vmem:[%s6 + $0x80] sm:$0xf]
  %v239 = vld [vmem:[%s6 + $0x84] sm:$0xff]
  %v240 = vld [vmem:[%s6 + $0x8c] sm:$0xf]
  %v241 = vld [vmem:[%s6 + $0x90] sm:$0xff]
  %v242 = vld [vmem:[%s6 + $0x98] sm:$0xf]
  %v243 = vld [vmem:[%s6 + $0x9c] sm:$0xff]
  %v244 = vld [vmem:[%s6 + $0xa4] sm:$0xf]
  %v245 = vld [vmem:[%s6 + $0xa8] sm:$0xff]
  %v246 = vld [vmem:[%s6 + $0xb0] sm:$0xf]
  %v247 = vld [vmem:[%s6 + $0xb4] sm:$0xff]
  %v248 = vld [vmem:[%s6 + $0xbc] sm:$0xf]
  %v249 = vld [vmem:[%s7] sm:$0x7]
  %v250 = vld [vmem:[%s8] sm:$0xf]
  %v251 = vld [vmem:[%s8 + $0x4] sm:$0xf]
  %v252 = vld [vmem:[%s8 + $0x8] sm:$0xf]
  %v253 = vld [vmem:[%s8 + $0xc] sm:$0xf]
  %v254 = vld [vmem:[%s8 + $0x10] sm:$0xf]
  %v255 = vld [vmem:[%s8 + $0x14] sm:$0xf]
  %v256 = vld [vmem:[%s8 + $0x18] sm:$0xf]
  %v257 = vld [vmem:[%s8 + $0x1c] sm:$0xf]
  %v258 = vld [vmem:[%s8 + $0x20] sm:$0xf]
  %v259 = vld [vmem:[%s8 + $0x24] sm:$0xf]
  %v260 = vld [vmem:[%s8 + $0x28] sm:$0xf]
  %v261 = vld [vmem:[%s8 + $0x2c] sm:$0xf]
  %v262 = vld [vmem:[%s8 + $0x30] sm:$0xf]
  %v263 = vld [vmem:[%s8 + $0x34] sm:$0xf]
  %v264 = vld [vmem:[%s8 + $0x38] sm:$0xf]
  %v265 = vld [vmem:[%s8 + $0x3c] sm:$0xf]
  %v266 = vld [vmem:[%s9] sm:$0x1]
  %v267 = vld [vmem:[%s10] sm:$0x1]
  %v268 = vld [vmem:[%s11] sm:$0x1]
  %v269 = vld [vmem:[%s12] sm:$0xf]
  %v270 = vld [vmem:[%s12 + $0x4] sm:$0xf]
  %v271 = vld [vmem:[%s12 + $0x8] sm:$0xf]
  %v272 = vld [vmem:[%s12 + $0xc] sm:$0xf]
  %v273 = vld [vmem:[%s12 + $0x10] sm:$0xf]
  %v274 = vld [vmem:[%s12 + $0x14] sm:$0xf]
  %v275 = vld [vmem:[%s12 + $0x18] sm:$0xf]
  %v276 = vld [vmem:[%s12 + $0x1c] sm:$0xf]
  %v277 = vld [vmem:[%s12 + $0x20] sm:$0xf]
  %v278 = vld [vmem:[%s12 + $0x24] sm:$0xf]
  %v279 = vld [vmem:[%s12 + $0x28] sm:$0xf]
  %v280 = vld [vmem:[%s12 + $0x2c] sm:$0xf]
  %v281 = vld [vmem:[%s12 + $0x30] sm:$0xf]
  %v282 = vld [vmem:[%s12 + $0x34] sm:$0xf]
  %v283 = vld [vmem:[%s12 + $0x38] sm:$0xf]
  %v284 = vld [vmem:[%s12 + $0x3c] sm:$0xf]
  %v285 = vld [vmem:[%s13] sm:$0x1]
  %286 = vadd.xlane.f32.xlu0 %v177
  %v287 = vpop.xlane.xlu0 %286
  %288 = vadd.xlane.f32.xlu0 %v180
  %v289 = vpop.xlane.xlu0 %288
  %290 = vadd.xlane.f32.xlu0 %v185
  %v291 = vpop.xlane.xlu0 %290
  %292 = vadd.xlane.f32.xlu0 %v188
  %v293 = vpop.xlane.xlu0 %292
  %294 = vadd.xlane.f32.xlu0 %v193
  %v295 = vpop.xlane.xlu0 %294
  %296 = vadd.xlane.f32.xlu0 %v196
  %v297 = vpop.xlane.xlu0 %296
  %v298 = vrcp.pop 128.0
  %v299 = vmul.f32 %v287, %v298
  %v300 = vmul.f32 %v289, %v298
  %v301 = vmul.f32 %v291, %v298
  %v302 = vmul.f32 %v293, %v298
  %v303 = vmul.f32 %v295, %v298
  %v304 = vmul.f32 %v297, %v298
  %v305 = vsub.f32 %v177, %v299
  %v306 = vsub.f32 %v180, %v300
  %v307 = vsub.f32 %v185, %v301
  %v308 = vsub.f32 %v188, %v302
  %v309 = vsub.f32 %v193, %v303
  %v310 = vsub.f32 %v196, %v304
  %v311 = vmul.f32 %v305, %v305
  %v312 = vmul.f32 %v306, %v306
  %v313 = vmul.f32 %v307, %v307
  %v314 = vmul.f32 %v308, %v308
  %v315 = vmul.f32 %v309, %v309
  %v316 = vmul.f32 %v310, %v310
  %317 = vadd.xlane.f32.xlu0 %v311
  %v318 = vpop.xlane.xlu0 %317
  %319 = vadd.xlane.f32.xlu0 %v312
  %v320 = vpop.xlane.xlu0 %319
  %321 = vadd.xlane.f32.xlu0 %v313
  %v322 = vpop.xlane.xlu0 %321
  %323 = vadd.xlane.f32.xlu0 %v314
  %v324 = vpop.xlane.xlu0 %323
  %325 = vadd.xlane.f32.xlu0 %v315
  %v326 = vpop.xlane.xlu0 %325
  %327 = vadd.xlane.f32.xlu0 %v316
  %v328 = vpop.xlane.xlu0 %327
  %v329 = vmul.f32 %v318, %v298
  %v330 = vmul.f32 %v320, %v298
  %v331 = vmul.f32 %v322, %v298
  %v332 = vmul.f32 %v324, %v298
  %v333 = vmul.f32 %v326, %v298
  %v334 = vmul.f32 %v328, %v298
  %v335 = vadd.f32 %v329, 1e-05
  %v336 = vadd.f32 %v330, 1e-05
  %v337 = vadd.f32 %v331, 1e-05
  %v338 = vadd.f32 %v332, 1e-05
  %v339 = vadd.f32 %v333, 1e-05
  %v340 = vadd.f32 %v334, 1e-05
  %v341 = vrsqrt.pop %v335
  %v342 = vrsqrt.pop %v336
  %v343 = vrsqrt.pop %v337
  %v344 = vrsqrt.pop %v338
  %v345 = vrsqrt.pop %v339
  %v346 = vrsqrt.pop %v340
  %v347 = vmul.f32 %v305, %v341
  %v348 = vmul.f32 %v306, %v342
  %v349 = vmul.f32 %v307, %v343
  %v350 = vmul.f32 %v308, %v344
  %v351 = vmul.f32 %v309, %v345
  %v352 = vmul.f32 %v310, %v346
  %v354 = vlaneseq
  %v355 = vshrl.u32 %v354, 7
  %v356 = vsub.s32 0, %v355
  %v357 = vrot.slane %v215, %v356
  %v359 = vmul.f32 %v347, %v357
  %v360 = vmul.f32 %v348, %v357
  %v361 = vmul.f32 %v349, %v357
  %v362 = vmul.f32 %v350, %v357
  %v363 = vmul.f32 %v351, %v357
  %v364 = vmul.f32 %v352, %v357
  %v366 = vlaneseq
  %v367 = vshrl.u32 %v366, 7
  %v368 = vsub.s32 0, %v367
  %v369 = vrot.slane %v216, %v368
  %v371 = vadd.f32 %v359, %v369
  %v372 = vadd.f32 %v360, %v369
  %v373 = vadd.f32 %v361, %v369
  %v374 = vadd.f32 %v362, %v369
  %v375 = vadd.f32 %v363, %v369
  %v376 = vadd.f32 %v364, %v369
  %v377 = vpack.c.bf16 %v372, %v371
  %v378 = vpack.c.bf16 %v374, %v373
  %v379 = vpack.c.bf16 %v376, %v375
  %v381 = vlaneseq
  %v382 = vshrl.u32 %v381, 7
  %v383 = vsub.s32 0, %v382
  %v384 = vrot.slane %v249, %v383
  %v385 = vlaneseq
  %v386 = vshrl.u32 %v385, 7
  %v387 = vsub.s32 1, %v386
  %v388 = vrot.slane %v249, %v387
  %v389 = vlaneseq
  %v390 = vshrl.u32 %v389, 7
  %v391 = vsub.s32 2, %v390
  %v392 = vrot.slane %v249, %v391
  %v428 = vunpack.c.l.b16 %v217
  %v429 = vunpack.c.h.b16 %v217
  %v430 = vunpack.c.l.b16 %v218
  %v431 = vunpack.c.l.b16 %v219
  %v432 = vunpack.c.h.b16 %v219
  %v433 = vunpack.c.l.b16 %v220
  %v434 = vunpack.c.l.b16 %v221
  %v435 = vunpack.c.h.b16 %v221
  %v436 = vunpack.c.l.b16 %v222
  %v437 = vunpack.c.l.b16 %v223
  %v438 = vunpack.c.h.b16 %v223
  %v439 = vunpack.c.l.b16 %v224
  %v440 = vunpack.c.l.b16 %v225
  %v441 = vunpack.c.h.b16 %v225
  %v442 = vunpack.c.l.b16 %v226
  %v443 = vunpack.c.l.b16 %v227
  %v444 = vunpack.c.h.b16 %v227
  %v445 = vunpack.c.l.b16 %v228
  %v446 = vunpack.c.l.b16 %v229
  %v447 = vunpack.c.h.b16 %v229
  %v448 = vunpack.c.l.b16 %v230
  %v449 = vunpack.c.l.b16 %v231
  %v450 = vunpack.c.h.b16 %v231
  %v451 = vunpack.c.l.b16 %v232
  %v452 = vunpack.c.l.b16 %v233
  %v453 = vunpack.c.h.b16 %v233
  %v454 = vunpack.c.l.b16 %v234
  %v455 = vunpack.c.l.b16 %v235
  %v456 = vunpack.c.h.b16 %v235
  %v457 = vunpack.c.l.b16 %v236
  %v458 = vunpack.c.l.b16 %v237
  %v459 = vunpack.c.h.b16 %v237
  %v460 = vunpack.c.l.b16 %v238
  %v461 = vunpack.c.l.b16 %v239
  %v462 = vunpack.c.h.b16 %v239
  %v463 = vunpack.c.l.b16 %v240
  %v464 = vunpack.c.l.b16 %v241
  %v465 = vunpack.c.h.b16 %v241
  %v466 = vunpack.c.l.b16 %v242
  %v467 = vunpack.c.l.b16 %v243
  %v468 = vunpack.c.h.b16 %v243
  %v469 = vunpack.c.l.b16 %v244
  %v470 = vunpack.c.l.b16 %v245
  %v471 = vunpack.c.h.b16 %v245
  %v472 = vunpack.c.l.b16 %v246
  %v473 = vunpack.c.l.b16 %v247
  %v474 = vunpack.c.h.b16 %v247
  %v475 = vunpack.c.l.b16 %v248
  %v476 = vpack.c.b16 %v431, %v428
  %v477 = vpack.c.b16 %v432, %v429
  %v478 = vpack.c.b16 %v433, %v430
  %v479 = vpack.c.b16 %v437, %v434
  %v480 = vpack.c.b16 %v438, %v435
  %v481 = vpack.c.b16 %v439, %v436
  %v482 = vpack.c.b16 %v443, %v440
  %v483 = vpack.c.b16 %v444, %v441
  %v484 = vpack.c.b16 %v445, %v442
  %v485 = vpack.c.b16 %v449, %v446
  %v486 = vpack.c.b16 %v450, %v447
  %v487 = vpack.c.b16 %v451, %v448
  %v488 = vpack.c.b16 %v455, %v452
  %v489 = vpack.c.b16 %v456, %v453
  %v490 = vpack.c.b16 %v457, %v454
  %v491 = vpack.c.b16 %v461, %v458
  %v492 = vpack.c.b16 %v462, %v459
  %v493 = vpack.c.b16 %v463, %v460
  %v494 = vpack.c.b16 %v467, %v464
  %v495 = vpack.c.b16 %v468, %v465
  %v496 = vpack.c.b16 %v469, %v466
  %v497 = vpack.c.b16 %v473, %v470
  %v498 = vpack.c.b16 %v474, %v471
  %v499 = vpack.c.b16 %v475, %v472
  %524 = vmatprep.subr.bf16.mxu0 %v498
  %525 = vmatpush1.bf16.msra.mxu0 %v497
  %526 = vmatprep.subr.bf16.mxu0 %v495
  %527 = vmatpush1.bf16.msra.mxu0 %v494
  %528 = vmatprep.subr.bf16.mxu0 %v492
  %529 = vmatpush1.bf16.msra.mxu0 %v491
  %530 = vmatprep.subr.bf16.mxu0 %v489
  %531 = vmatpush1.bf16.msra.mxu0 %v488
  %532 = vmatprep.subr.bf16.mxu0 %v486
  %533 = vmatpush1.bf16.msra.mxu0 %v485
  %534 = vmatprep.subr.bf16.mxu0 %v483
  %535 = vmatpush1.bf16.msra.mxu0 %v482
  %536 = vmatprep.subr.bf16.mxu0 %v480
  %537 = vmatpush1.bf16.msra.mxu0 %v479
  %538 = vmatprep.subr.bf16.mxu0 %v477
  %539 = vmatpush1.bf16.msra.mxu0 %v476
  %540 = vmatprep.subr.bf16.mxu0 0
  %541 = vmatpush2.bf16.msra.mxu0 0
  %542 = vmatprep.subr.bf16.mxu0 0
  %543 = vmatpush2.bf16.msra.mxu0 0
  %544 = vmatprep.subr.bf16.mxu0 0
  %545 = vmatpush2.bf16.msra.mxu0 0
  %546 = vmatprep.subr.bf16.mxu0 0
  %547 = vmatpush2.bf16.msra.mxu0 0
  %548 = vmatprep.subr.bf16.mxu0 0
  %549 = vmatpush2.bf16.msra.mxu0 0
  %550 = vmatprep.subr.bf16.mxu0 0
  %551 = vmatpush2.bf16.msra.mxu0 0
  %552 = vmatprep.subr.bf16.mxu0 0
  %553 = vmatpush2.bf16.msra.mxu0 0
  %554 = vmatprep.subr.bf16.mxu0 0
  %555 = vmatpush2.bf16.msra.mxu0 0
  %556 = vmatprep.mubr.bf16.mxu0 0
  %557 = vmatmul.mubr.bf16.gmra.mxu0 %v377
  %v558 = vpop.f32.mrf.mxu0
  %v559 = vadd.f32 %v384, %v558
  %v560 = vpop.f32.mrf.mxu0
  %v561 = vadd.f32 %v388, %v560
  %v562 = vpop.f32.mrf.mxu0
  %v563 = vadd.f32 %v384, %v562
  %v564 = vpop.f32.mrf.mxu0
  %v565 = vadd.f32 %v388, %v564
  %566 = vmatprep.mubr.bf16.mxu0 0
  %567 = vmatmul.mubr.bf16.gmra.mxu0 %v378
  %v568 = vpop.f32.mrf.mxu0
  %v569 = vadd.f32 %v384, %v568
  %v570 = vpop.f32.mrf.mxu0
  %v571 = vadd.f32 %v388, %v570
  %v572 = vpop.f32.mrf.mxu0
  %v573 = vadd.f32 %v384, %v572
  %v574 = vpop.f32.mrf.mxu0
  %v575 = vadd.f32 %v388, %v574
  %576 = vmatprep.mubr.bf16.mxu0 0
  %577 = vmatmul.mubr.bf16.gmra.mxu0 %v379
  %v578 = vpop.f32.mrf.mxu0
  %v579 = vadd.f32 %v384, %v578
  %v580 = vpop.f32.mrf.mxu0
  %v581 = vadd.f32 %v388, %v580
  %v582 = vpop.f32.mrf.mxu0
  %v583 = vadd.f32 %v384, %v582
  %v584 = vpop.f32.mrf.mxu0
  %v585 = vadd.f32 %v388, %v584
  %586 = vdwg.mxu0
  %587 = vmatprep.subr.bf16.mxu0 0
  %588 = vmatpush1.bf16.msra.mxu0 %v499
  %589 = vmatprep.subr.bf16.mxu0 0
  %590 = vmatpush1.bf16.msra.mxu0 %v496
  %591 = vmatprep.subr.bf16.mxu0 0
  %592 = vmatpush1.bf16.msra.mxu0 %v493
  %593 = vmatprep.subr.bf16.mxu0 0
  %594 = vmatpush1.bf16.msra.mxu0 %v490
  %595 = vmatprep.subr.bf16.mxu0 0
  %596 = vmatpush1.bf16.msra.mxu0 %v487
  %597 = vmatprep.subr.bf16.mxu0 0
  %598 = vmatpush1.bf16.msra.mxu0 %v484
  %599 = vmatprep.subr.bf16.mxu0 0
  %600 = vmatpush1.bf16.msra.mxu0 %v481
  %601 = vmatprep.subr.bf16.mxu0 0
  %602 = vmatpush1.bf16.msra.mxu0 %v478
  %603 = vmatprep.subr.bf16.mxu0 0
  %604 = vmatpush2.bf16.msra.mxu0 0
  %605 = vmatprep.subr.bf16.mxu0 0
  %606 = vmatpush2.bf16.msra.mxu0 0
  %607 = vmatprep.subr.bf16.mxu0 0
  %608 = vmatpush2.bf16.msra.mxu0 0
  %609 = vmatprep.subr.bf16.mxu0 0
  %610 = vmatpush2.bf16.msra.mxu0 0
  %611 = vmatprep.subr.bf16.mxu0 0
  %612 = vmatpush2.bf16.msra.mxu0 0
  %613 = vmatprep.subr.bf16.mxu0 0
  %614 = vmatpush2.bf16.msra.mxu0 0
  %615 = vmatprep.subr.bf16.mxu0 0
  %616 = vmatpush2.bf16.msra.mxu0 0
  %617 = vmatprep.subr.bf16.mxu0 0
  %618 = vmatpush2.bf16.msra.mxu0 0
  %619 = vmatprep.mubr.bf16.mxu0 0
  %620 = vmatmul.mubr.bf16.gmra.mxu0 %v377
  %v621 = vpop.f32.mrf.mxu0
  %v622 = vadd.f32 %v392, %v621
  %v623 = vpop.f32.mrf.mxu0
  %v624 = vpop.f32.mrf.mxu0
  %v625 = vadd.f32 %v392, %v624
  %v626 = vpop.f32.mrf.mxu0
  %627 = vmatprep.mubr.bf16.mxu0 0
  %628 = vmatmul.mubr.bf16.gmra.mxu0 %v378
  %v629 = vpop.f32.mrf.mxu0
  %v630 = vadd.f32 %v392, %v629
  %v631 = vpop.f32.mrf.mxu0
  %v632 = vpop.f32.mrf.mxu0
  %v633 = vadd.f32 %v392, %v632
  %v634 = vpop.f32.mrf.mxu0
  %635 = vmatprep.mubr.bf16.mxu0 0
  %636 = vmatmul.mubr.bf16.gmra.mxu0 %v379
  %v637 = vpop.f32.mrf.mxu0
  %v638 = vadd.f32 %v392, %v637
  %v639 = vpop.f32.mrf.mxu0
  %v640 = vpop.f32.mrf.mxu0
  %v641 = vadd.f32 %v392, %v640
  %v642 = vpop.f32.mrf.mxu0
  %643 = vdwg.mxu0
  %v644 = vmul.f32 %v559, %v561
  %v645 = vmul.f32 %v563, %v565
  %v646 = vmul.f32 %v569, %v571
  %v647 = vmul.f32 %v573, %v575
  %v648 = vmul.f32 %v579, %v581
  %v649 = vmul.f32 %v583, %v585
  %v650 = vpack.c.bf16 %v645, %v644
  %v651 = vpack.c.bf16 %v647, %v646
  %v652 = vpack.c.bf16 %v649, %v648
  %v669 = vunpack.c.l.b16 %v199
  %v670 = vunpack.c.l.b16 %v200
  %v671 = vunpack.c.l.b16 %v201
  %v672 = vunpack.c.l.b16 %v202
  %v673 = vunpack.c.l.b16 %v203
  %v674 = vunpack.c.l.b16 %v204
  %v675 = vunpack.c.l.b16 %v205
  %v676 = vunpack.c.l.b16 %v206
  %v677 = vunpack.c.l.b16 %v207
  %v678 = vunpack.c.l.b16 %v208
  %v679 = vunpack.c.l.b16 %v209
  %v680 = vunpack.c.l.b16 %v210
  %v681 = vunpack.c.l.b16 %v211
  %v682 = vunpack.c.l.b16 %v212
  %v683 = vunpack.c.l.b16 %v213
  %v684 = vunpack.c.l.b16 %v214
  %v685 = vpack.c.b16 %v670, %v669
  %v686 = vpack.c.b16 %v672, %v671
  %v687 = vpack.c.b16 %v674, %v673
  %v688 = vpack.c.b16 %v676, %v675
  %v689 = vpack.c.b16 %v678, %v677
  %v690 = vpack.c.b16 %v680, %v679
  %v691 = vpack.c.b16 %v682, %v681
  %v692 = vpack.c.b16 %v684, %v683
  %701 = vmatprep.subr.bf16.mxu0 0
  %702 = vmatpush1.bf16.msra.mxu0 %v692
  %703 = vmatprep.subr.bf16.mxu0 0
  %704 = vmatpush1.bf16.msra.mxu0 %v691
  %705 = vmatprep.subr.bf16.mxu0 0
  %706 = vmatpush1.bf16.msra.mxu0 %v690
  %707 = vmatprep.subr.bf16.mxu0 0
  %708 = vmatpush1.bf16.msra.mxu0 %v689
  %709 = vmatprep.subr.bf16.mxu0 0
  %710 = vmatpush1.bf16.msra.mxu0 %v688
  %711 = vmatprep.subr.bf16.mxu0 0
  %712 = vmatpush1.bf16.msra.mxu0 %v687
  %713 = vmatprep.subr.bf16.mxu0 0
  %714 = vmatpush1.bf16.msra.mxu0 %v686
  %715 = vmatprep.subr.bf16.mxu0 0
  %716 = vmatpush1.bf16.msra.mxu0 %v685
  %717 = vmatprep.subr.bf16.mxu0 0
  %718 = vmatpush2.bf16.msra.mxu0 0
  %719 = vmatprep.subr.bf16.mxu0 0
  %720 = vmatpush2.bf16.msra.mxu0 0
  %721 = vmatprep.subr.bf16.mxu0 0
  %722 = vmatpush2.bf16.msra.mxu0 0
  %723 = vmatprep.subr.bf16.mxu0 0
  %724 = vmatpush2.bf16.msra.mxu0 0
  %725 = vmatprep.subr.bf16.mxu0 0
  %726 = vmatpush2.bf16.msra.mxu0 0
  %727 = vmatprep.subr.bf16.mxu0 0
  %728 = vmatpush2.bf16.msra.mxu0 0
  %729 = vmatprep.subr.bf16.mxu0 0
  %730 = vmatpush2.bf16.msra.mxu0 0
  %731 = vmatprep.subr.bf16.mxu0 0
  %732 = vmatpush2.bf16.msra.mxu0 0
  %733 = vmatprep.mubr.bf16.mxu0 0
  %734 = vmatmul.mubr.bf16.gmra.mxu0 %v650
  %v735 = vpop.f32.mrf.mxu0
  %v736 = vadd.f32 0.0, %v735
  %v737 = vpop.f32.mrf.mxu0
  %v738 = vpop.f32.mrf.mxu0
  %v739 = vadd.f32 0.0, %v738
  %v740 = vpop.f32.mrf.mxu0
  %741 = vmatprep.mubr.bf16.mxu0 0
  %742 = vmatmul.mubr.bf16.gmra.mxu0 %v651
  %v743 = vpop.f32.mrf.mxu0
  %v744 = vadd.f32 0.0, %v743
  %v745 = vpop.f32.mrf.mxu0
  %v746 = vpop.f32.mrf.mxu0
  %v747 = vadd.f32 0.0, %v746
  %v748 = vpop.f32.mrf.mxu0
  %749 = vmatprep.mubr.bf16.mxu0 0
  %750 = vmatmul.mubr.bf16.gmra.mxu0 %v652
  %v751 = vpop.f32.mrf.mxu0
  %v752 = vadd.f32 0.0, %v751
  %v753 = vpop.f32.mrf.mxu0
  %v754 = vpop.f32.mrf.mxu0
  %v755 = vadd.f32 0.0, %v754
  %v756 = vpop.f32.mrf.mxu0
  %757 = vdwg.mxu0
  %v758 = vmul.f32 %v559, %v575
  %v759 = vmul.f32 %v563, %v581
  %v760 = vmul.f32 %v569, %v585
  %v761 = vmul.f32 %v573, %v561
  %v762 = vmul.f32 %v579, %v565
  %v763 = vmul.f32 %v583, %v571
  %v764 = vpack.c.bf16 %v759, %v758
  %v765 = vpack.c.bf16 %v761, %v760
  %v766 = vpack.c.bf16 %v763, %v762
  %767 = vmatprep.subr.bf16.mxu0 0
  %768 = vmatpush1.bf16.msra.mxu0 %v692
  %769 = vmatprep.subr.bf16.mxu0 0
  %770 = vmatpush1.bf16.msra.mxu0 %v691
  %771 = vmatprep.subr.bf16.mxu0 0
  %772 = vmatpush1.bf16.msra.mxu0 %v690
  %773 = vmatprep.subr.bf16.mxu0 0
  %774 = vmatpush1.bf16.msra.mxu0 %v689
  %775 = vmatprep.subr.bf16.mxu0 0
  %776 = vmatpush1.bf16.msra.mxu0 %v688
  %777 = vmatprep.subr.bf16.mxu0 0
  %778 = vmatpush1.bf16.msra.mxu0 %v687
  %779 = vmatprep.subr.bf16.mxu0 0
  %780 = vmatpush1.bf16.msra.mxu0 %v686
  %781 = vmatprep.subr.bf16.mxu0 0
  %782 = vmatpush1.bf16.msra.mxu0 %v685
  %783 = vmatprep.subr.bf16.mxu0 0
  %784 = vmatpush2.bf16.msra.mxu0 0
  %785 = vmatprep.subr.bf16.mxu0 0
  %786 = vmatpush2.bf16.msra.mxu0 0
  %787 = vmatprep.subr.bf16.mxu0 0
  %788 = vmatpush2.bf16.msra.mxu0 0
  %789 = vmatprep.subr.bf16.mxu0 0
  %790 = vmatpush2.bf16.msra.mxu0 0
  %791 = vmatprep.subr.bf16.mxu0 0
  %792 = vmatpush2.bf16.msra.mxu0 0
  %793 = vmatprep.subr.bf16.mxu0 0
  %794 = vmatpush2.bf16.msra.mxu0 0
  %795 = vmatprep.subr.bf16.mxu0 0
  %796 = vmatpush2.bf16.msra.mxu0 0
  %797 = vmatprep.subr.bf16.mxu0 0
  %798 = vmatpush2.bf16.msra.mxu0 0
  %799 = vmatprep.mubr.bf16.mxu0 0
  %800 = vmatmul.mubr.bf16.gmra.mxu0 %v764
  %v801 = vpop.f32.mrf.mxu0
  %v802 = vadd.f32 0.0, %v801
  %v803 = vpop.f32.mrf.mxu0
  %v804 = vpop.f32.mrf.mxu0
  %v805 = vadd.f32 0.0, %v804
  %v806 = vpop.f32.mrf.mxu0
  %807 = vmatprep.mubr.bf16.mxu0 0
  %808 = vmatmul.mubr.bf16.gmra.mxu0 %v765
  %v809 = vpop.f32.mrf.mxu0
  %v810 = vadd.f32 0.0, %v809
  %v811 = vpop.f32.mrf.mxu0
  %v812 = vpop.f32.mrf.mxu0
  %v813 = vadd.f32 0.0, %v812
  %v814 = vpop.f32.mrf.mxu0
  %815 = vmatprep.mubr.bf16.mxu0 0
  %816 = vmatmul.mubr.bf16.gmra.mxu0 %v766
  %v817 = vpop.f32.mrf.mxu0
  %v818 = vadd.f32 0.0, %v817
  %v819 = vpop.f32.mrf.mxu0
  %v820 = vpop.f32.mrf.mxu0
  %v821 = vadd.f32 0.0, %v820
  %v822 = vpop.f32.mrf.mxu0
  %823 = vdwg.mxu0
  %v824 = vmax.f32 %v736, %v802
  %v825 = vmax.f32 %v739, %v805
  %v826 = vmax.f32 %v744, %v810
  %v827 = vmax.f32 %v747, %v813
  %v828 = vmax.f32 %v752, %v818
  %v829 = vmax.f32 %v755, %v821
  %v830 = vsub.f32 %v736, %v824
  %v831 = vsub.f32 %v739, %v825
  %v832 = vsub.f32 %v744, %v826
  %v833 = vsub.f32 %v747, %v827
  %v834 = vsub.f32 %v752, %v828
  %v835 = vsub.f32 %v755, %v829
  %v836 = vmul.f32 %v830, 1.442695
  %v837 = vpow.pop %v836
  %v838 = vmul.f32 %v831, 1.442695
  %v839 = vpow.pop %v838
  %v840 = vmul.f32 %v832, 1.442695
  %v841 = vpow.pop %v840
  %v842 = vmul.f32 %v833, 1.442695
  %v843 = vpow.pop %v842
  %v844 = vmul.f32 %v834, 1.442695
  %v845 = vpow.pop %v844
  %v846 = vmul.f32 %v835, 1.442695
  %v847 = vpow.pop %v846
  %v848 = vsub.f32 %v802, %v824
  %v849 = vsub.f32 %v805, %v825
  %v850 = vsub.f32 %v810, %v826
  %v851 = vsub.f32 %v813, %v827
  %v852 = vsub.f32 %v818, %v828
  %v853 = vsub.f32 %v821, %v829
  %v854 = vmul.f32 %v848, 1.442695
  %v855 = vpow.pop %v854
  %v856 = vmul.f32 %v849, 1.442695
  %v857 = vpow.pop %v856
  %v858 = vmul.f32 %v850, 1.442695
  %v859 = vpow.pop %v858
  %v860 = vmul.f32 %v851, 1.442695
  %v861 = vpow.pop %v860
  %v862 = vmul.f32 %v852, 1.442695
  %v863 = vpow.pop %v862
  %v864 = vmul.f32 %v853, 1.442695
  %v865 = vpow.pop %v864
  %v866 = vmul.f32 %v837, %v622
  %v867 = vmul.f32 %v839, %v625
  %v868 = vmul.f32 %v841, %v630
  %v869 = vmul.f32 %v843, %v633
  %v870 = vmul.f32 %v845, %v638
  %v871 = vmul.f32 %v847, %v641
  %v872 = vmul.f32 %v855, %v633
  %v873 = vmul.f32 %v857, %v638
  %v874 = vmul.f32 %v859, %v641
  %v875 = vmul.f32 %v861, %v622
  %v876 = vmul.f32 %v863, %v625
  %v877 = vmul.f32 %v865, %v630
  %v878 = vadd.f32 %v866, %v872
  %v879 = vadd.f32 %v867, %v873
  %v880 = vadd.f32 %v868, %v874
  %v881 = vadd.f32 %v869, %v875
  %v882 = vadd.f32 %v870, %v876
  %v883 = vadd.f32 %v871, %v877
  %v884 = vadd.f32 %v837, %v855
  %v885 = vadd.f32 %v839, %v857
  %v886 = vadd.f32 %v841, %v859
  %v887 = vadd.f32 %v843, %v861
  %v888 = vadd.f32 %v845, %v863
  %v889 = vadd.f32 %v847, %v865
  %v890 = vrcp.pop %v884
  %v891 = vrcp.pop %v885
  %v892 = vrcp.pop %v886
  %v893 = vrcp.pop %v887
  %v894 = vrcp.pop %v888
  %v895 = vrcp.pop %v889
  %v896 = vmul.f32 %v878, %v890
  %v897 = vmul.f32 %v879, %v891
  %v898 = vmul.f32 %v880, %v892
  %v899 = vmul.f32 %v881, %v893
  %v900 = vmul.f32 %v882, %v894
  %v901 = vmul.f32 %v883, %v895
  %v902 = vpack.c.bf16 %v897, %v896
  %v903 = vpack.c.bf16 %v899, %v898
  %v904 = vpack.c.bf16 %v901, %v900
  %v921 = vunpack.c.l.b16 %v250
  %v922 = vunpack.c.l.b16 %v251
  %v923 = vunpack.c.l.b16 %v252
  %v924 = vunpack.c.l.b16 %v253
  %v925 = vunpack.c.l.b16 %v254
  %v926 = vunpack.c.l.b16 %v255
  %v927 = vunpack.c.l.b16 %v256
  %v928 = vunpack.c.l.b16 %v257
  %v929 = vunpack.c.l.b16 %v258
  %v930 = vunpack.c.l.b16 %v259
  %v931 = vunpack.c.l.b16 %v260
  %v932 = vunpack.c.l.b16 %v261
  %v933 = vunpack.c.l.b16 %v262
  %v934 = vunpack.c.l.b16 %v263
  %v935 = vunpack.c.l.b16 %v264
  %v936 = vunpack.c.l.b16 %v265
  %v937 = vpack.c.b16 %v922, %v921
  %v938 = vpack.c.b16 %v924, %v923
  %v939 = vpack.c.b16 %v926, %v925
  %v940 = vpack.c.b16 %v928, %v927
  %v941 = vpack.c.b16 %v930, %v929
  %v942 = vpack.c.b16 %v932, %v931
  %v943 = vpack.c.b16 %v934, %v933
  %v944 = vpack.c.b16 %v936, %v935
  %953 = vmatprep.subr.bf16.mxu0 0
  %954 = vmatpush1.bf16.msra.mxu0 %v944
  %955 = vmatprep.subr.bf16.mxu0 0
  %956 = vmatpush1.bf16.msra.mxu0 %v943
  %957 = vmatprep.subr.bf16.mxu0 0
  %958 = vmatpush1.bf16.msra.mxu0 %v942
  %959 = vmatprep.subr.bf16.mxu0 0
  %960 = vmatpush1.bf16.msra.mxu0 %v941
  %961 = vmatprep.subr.bf16.mxu0 0
  %962 = vmatpush1.bf16.msra.mxu0 %v940
  %963 = vmatprep.subr.bf16.mxu0 0
  %964 = vmatpush1.bf16.msra.mxu0 %v939
  %965 = vmatprep.subr.bf16.mxu0 0
  %966 = vmatpush1.bf16.msra.mxu0 %v938
  %967 = vmatprep.subr.bf16.mxu0 0
  %968 = vmatpush1.bf16.msra.mxu0 %v937
  %969 = vmatprep.subr.bf16.mxu0 0
  %970 = vmatpush2.bf16.msra.mxu0 0
  %971 = vmatprep.subr.bf16.mxu0 0
  %972 = vmatpush2.bf16.msra.mxu0 0
  %973 = vmatprep.subr.bf16.mxu0 0
  %974 = vmatpush2.bf16.msra.mxu0 0
  %975 = vmatprep.subr.bf16.mxu0 0
  %976 = vmatpush2.bf16.msra.mxu0 0
  %977 = vmatprep.subr.bf16.mxu0 0
  %978 = vmatpush2.bf16.msra.mxu0 0
  %979 = vmatprep.subr.bf16.mxu0 0
  %980 = vmatpush2.bf16.msra.mxu0 0
  %981 = vmatprep.subr.bf16.mxu0 0
  %982 = vmatpush2.bf16.msra.mxu0 0
  %983 = vmatprep.subr.bf16.mxu0 0
  %984 = vmatpush2.bf16.msra.mxu0 0
  %985 = vmatprep.mubr.bf16.mxu0 0
  %986 = vmatmul.mubr.bf16.gmra.mxu0 %v902
  %v987 = vpop.f32.mrf.mxu0
  %v988 = vadd.f32 0.0, %v987
  %v989 = vpop.f32.mrf.mxu0
  %v990 = vpop.f32.mrf.mxu0
  %v991 = vadd.f32 0.0, %v990
  %v992 = vpop.f32.mrf.mxu0
  %993 = vmatprep.mubr.bf16.mxu0 0
  %994 = vmatmul.mubr.bf16.gmra.mxu0 %v903
  %v995 = vpop.f32.mrf.mxu0
  %v996 = vadd.f32 0.0, %v995
  %v997 = vpop.f32.mrf.mxu0
  %v998 = vpop.f32.mrf.mxu0
  %v999 = vadd.f32 0.0, %v998
  %v1000 = vpop.f32.mrf.mxu0
  %1001 = vmatprep.mubr.bf16.mxu0 0
  %1002 = vmatmul.mubr.bf16.gmra.mxu0 %v904
  %v1003 = vpop.f32.mrf.mxu0
  %v1004 = vadd.f32 0.0, %v1003
  %v1005 = vpop.f32.mrf.mxu0
  %v1006 = vpop.f32.mrf.mxu0
  %v1007 = vadd.f32 0.0, %v1006
  %v1008 = vpop.f32.mrf.mxu0
  %1009 = vdwg.mxu0
  %v1010 = vadd.f32 %v177, %v988
  %v1011 = vadd.f32 %v180, %v991
  %v1012 = vadd.f32 %v185, %v996
  %v1013 = vadd.f32 %v188, %v999
  %v1014 = vadd.f32 %v193, %v1004
  %v1015 = vadd.f32 %v196, %v1007
  %v1017 = vlaneseq
  %v1018 = vshrl.u32 %v1017, 7
  %v1019 = vsub.s32 0, %v1018
  %v1020 = vrot.slane %v266, %v1019
  %v1022 = vadd.f32 %v1010, %v1020
  %v1023 = vadd.f32 %v1011, %v1020
  %v1024 = vadd.f32 %v1012, %v1020
  %v1025 = vadd.f32 %v1013, %v1020
  %v1026 = vadd.f32 %v1014, %v1020
  %v1027 = vadd.f32 %v1015, %v1020
  %1028 = vadd.xlane.f32.xlu0 %v1022
  %v1029 = vpop.xlane.xlu0 %1028
  %1030 = vadd.xlane.f32.xlu0 %v1023
  %v1031 = vpop.xlane.xlu0 %1030
  %1032 = vadd.xlane.f32.xlu0 %v1024
  %v1033 = vpop.xlane.xlu0 %1032
  %1034 = vadd.xlane.f32.xlu0 %v1025
  %v1035 = vpop.xlane.xlu0 %1034
  %1036 = vadd.xlane.f32.xlu0 %v1026
  %v1037 = vpop.xlane.xlu0 %1036
  %1038 = vadd.xlane.f32.xlu0 %v1027
  %v1039 = vpop.xlane.xlu0 %1038
  %v1040 = vmul.f32 %v1029, %v298
  %v1041 = vmul.f32 %v1031, %v298
  %v1042 = vmul.f32 %v1033, %v298
  %v1043 = vmul.f32 %v1035, %v298
  %v1044 = vmul.f32 %v1037, %v298
  %v1045 = vmul.f32 %v1039, %v298
  %v1046 = vsub.f32 %v1022, %v1040
  %v1047 = vsub.f32 %v1023, %v1041
  %v1048 = vsub.f32 %v1024, %v1042
  %v1049 = vsub.f32 %v1025, %v1043
  %v1050 = vsub.f32 %v1026, %v1044
  %v1051 = vsub.f32 %v1027, %v1045
  %v1052 = vmul.f32 %v1046, %v1046
  %v1053 = vmul.f32 %v1047, %v1047
  %v1054 = vmul.f32 %v1048, %v1048
  %v1055 = vmul.f32 %v1049, %v1049
  %v1056 = vmul.f32 %v1050, %v1050
  %v1057 = vmul.f32 %v1051, %v1051
  %1058 = vadd.xlane.f32.xlu0 %v1052
  %v1059 = vpop.xlane.xlu0 %1058
  %1060 = vadd.xlane.f32.xlu0 %v1053
  %v1061 = vpop.xlane.xlu0 %1060
  %1062 = vadd.xlane.f32.xlu0 %v1054
  %v1063 = vpop.xlane.xlu0 %1062
  %1064 = vadd.xlane.f32.xlu0 %v1055
  %v1065 = vpop.xlane.xlu0 %1064
  %1066 = vadd.xlane.f32.xlu0 %v1056
  %v1067 = vpop.xlane.xlu0 %1066
  %1068 = vadd.xlane.f32.xlu0 %v1057
  %v1069 = vpop.xlane.xlu0 %1068
  %v1070 = vmul.f32 %v1059, %v298
  %v1071 = vmul.f32 %v1061, %v298
  %v1072 = vmul.f32 %v1063, %v298
  %v1073 = vmul.f32 %v1065, %v298
  %v1074 = vmul.f32 %v1067, %v298
  %v1075 = vmul.f32 %v1069, %v298
  %v1076 = vadd.f32 %v1070, 1e-05
  %v1077 = vadd.f32 %v1071, 1e-05
  %v1078 = vadd.f32 %v1072, 1e-05
  %v1079 = vadd.f32 %v1073, 1e-05
  %v1080 = vadd.f32 %v1074, 1e-05
  %v1081 = vadd.f32 %v1075, 1e-05
  %v1082 = vrsqrt.pop %v1076
  %v1083 = vrsqrt.pop %v1077
  %v1084 = vrsqrt.pop %v1078
  %v1085 = vrsqrt.pop %v1079
  %v1086 = vrsqrt.pop %v1080
  %v1087 = vrsqrt.pop %v1081
  %v1088 = vmul.f32 %v1046, %v1082
  %v1089 = vmul.f32 %v1047, %v1083
  %v1090 = vmul.f32 %v1048, %v1084
  %v1091 = vmul.f32 %v1049, %v1085
  %v1092 = vmul.f32 %v1050, %v1086
  %v1093 = vmul.f32 %v1051, %v1087
  %v1095 = vlaneseq
  %v1096 = vshrl.u32 %v1095, 7
  %v1097 = vsub.s32 0, %v1096
  %v1098 = vrot.slane %v267, %v1097
  %v1100 = vmul.f32 %v1088, %v1098
  %v1101 = vmul.f32 %v1089, %v1098
  %v1102 = vmul.f32 %v1090, %v1098
  %v1103 = vmul.f32 %v1091, %v1098
  %v1104 = vmul.f32 %v1092, %v1098
  %v1105 = vmul.f32 %v1093, %v1098
  %v1107 = vlaneseq
  %v1108 = vshrl.u32 %v1107, 7
  %v1109 = vsub.s32 0, %v1108
  %v1110 = vrot.slane %v268, %v1109
  %v1112 = vadd.f32 %v1100, %v1110
  %v1113 = vadd.f32 %v1101, %v1110
  %v1114 = vadd.f32 %v1102, %v1110
  %v1115 = vadd.f32 %v1103, %v1110
  %v1116 = vadd.f32 %v1104, %v1110
  %v1117 = vadd.f32 %v1105, %v1110
  %v1118 = vpack.c.bf16 %v1113, %v1112
  %v1119 = vpack.c.bf16 %v1115, %v1114
  %v1120 = vpack.c.bf16 %v1117, %v1116
  %v1122 = vlaneseq
  %v1123 = vshrl.u32 %v1122, 7
  %v1124 = vsub.s32 0, %v1123
  %v1125 = vrot.slane %v285, %v1124
  %v1143 = vunpack.c.l.b16 %v269
  %v1144 = vunpack.c.l.b16 %v270
  %v1145 = vunpack.c.l.b16 %v271
  %v1146 = vunpack.c.l.b16 %v272
  %v1147 = vunpack.c.l.b16 %v273
  %v1148 = vunpack.c.l.b16 %v274
  %v1149 = vunpack.c.l.b16 %v275
  %v1150 = vunpack.c.l.b16 %v276
  %v1151 = vunpack.c.l.b16 %v277
  %v1152 = vunpack.c.l.b16 %v278
  %v1153 = vunpack.c.l.b16 %v279
  %v1154 = vunpack.c.l.b16 %v280
  %v1155 = vunpack.c.l.b16 %v281
  %v1156 = vunpack.c.l.b16 %v282
  %v1157 = vunpack.c.l.b16 %v283
  %v1158 = vunpack.c.l.b16 %v284
  %v1159 = vpack.c.b16 %v1144, %v1143
  %v1160 = vpack.c.b16 %v1146, %v1145
  %v1161 = vpack.c.b16 %v1148, %v1147
  %v1162 = vpack.c.b16 %v1150, %v1149
  %v1163 = vpack.c.b16 %v1152, %v1151
  %v1164 = vpack.c.b16 %v1154, %v1153
  %v1165 = vpack.c.b16 %v1156, %v1155
  %v1166 = vpack.c.b16 %v1158, %v1157
  %1175 = vmatprep.subr.bf16.mxu0 0
  %1176 = vmatpush1.bf16.msra.mxu0 %v1166
  %1177 = vmatprep.subr.bf16.mxu0 0
  %1178 = vmatpush1.bf16.msra.mxu0 %v1165
  %1179 = vmatprep.subr.bf16.mxu0 0
  %1180 = vmatpush1.bf16.msra.mxu0 %v1164
  %1181 = vmatprep.subr.bf16.mxu0 0
  %1182 = vmatpush1.bf16.msra.mxu0 %v1163
  %1183 = vmatprep.subr.bf16.mxu0 0
  %1184 = vmatpush1.bf16.msra.mxu0 %v1162
  %1185 = vmatprep.subr.bf16.mxu0 0
  %1186 = vmatpush1.bf16.msra.mxu0 %v1161
  %1187 = vmatprep.subr.bf16.mxu0 0
  %1188 = vmatpush1.bf16.msra.mxu0 %v1160
  %1189 = vmatprep.subr.bf16.mxu0 0
  %1190 = vmatpush1.bf16.msra.mxu0 %v1159
  %1191 = vmatprep.subr.bf16.mxu0 0
  %1192 = vmatpush2.bf16.msra.mxu0 0
  %1193 = vmatprep.subr.bf16.mxu0 0
  %1194 = vmatpush2.bf16.msra.mxu0 0
  %1195 = vmatprep.subr.bf16.mxu0 0
  %1196 = vmatpush2.bf16.msra.mxu0 0
  %1197 = vmatprep.subr.bf16.mxu0 0
  %1198 = vmatpush2.bf16.msra.mxu0 0
  %1199 = vmatprep.subr.bf16.mxu0 0
  %1200 = vmatpush2.bf16.msra.mxu0 0
  %1201 = vmatprep.subr.bf16.mxu0 0
  %1202 = vmatpush2.bf16.msra.mxu0 0
  %1203 = vmatprep.subr.bf16.mxu0 0
  %1204 = vmatpush2.bf16.msra.mxu0 0
  %1205 = vmatprep.subr.bf16.mxu0 0
  %1206 = vmatpush2.bf16.msra.mxu0 0
  %1207 = vmatprep.mubr.bf16.mxu0 0
  %1208 = vmatmul.mubr.bf16.gmra.mxu0 %v1118
  %v1209 = vpop.f32.mrf.mxu0
  %v1210 = vadd.f32 %v1125, %v1209
  %v1211 = vpop.f32.mrf.mxu0
  %v1212 = vpop.f32.mrf.mxu0
  %v1213 = vadd.f32 %v1125, %v1212
  %v1214 = vpop.f32.mrf.mxu0
  %1215 = vmatprep.mubr.bf16.mxu0 0
  %1216 = vmatmul.mubr.bf16.gmra.mxu0 %v1119
  %v1217 = vpop.f32.mrf.mxu0
  %v1218 = vadd.f32 %v1125, %v1217
  %v1219 = vpop.f32.mrf.mxu0
  %v1220 = vpop.f32.mrf.mxu0
  %v1221 = vadd.f32 %v1125, %v1220
  %v1222 = vpop.f32.mrf.mxu0
  %1223 = vmatprep.mubr.bf16.mxu0 0
  %1224 = vmatmul.mubr.bf16.gmra.mxu0 %v1120
  %v1225 = vpop.f32.mrf.mxu0
  %v1226 = vadd.f32 %v1125, %v1225
  %v1227 = vpop.f32.mrf.mxu0
  %v1228 = vpop.f32.mrf.mxu0
  %v1229 = vadd.f32 %v1125, %v1228
  %v1230 = vpop.f32.mrf.mxu0
  %1231 = vdwg.mxu0
  %v1232 = vmul.f32 %v1210, 0.5
  %v1233 = vmul.f32 %v1213, 0.5
  %v1234 = vmul.f32 %v1218, 0.5
  %v1235 = vmul.f32 %v1221, 0.5
  %v1236 = vmul.f32 %v1226, 0.5
  %v1237 = vmul.f32 %v1229, 0.5
  %v1238 = vmul.f32 %v1210, 0.70710677
  %v1239 = vmul.f32 %v1213, 0.70710677
  %v1240 = vmul.f32 %v1218, 0.70710677
  %v1241 = vmul.f32 %v1221, 0.70710677
  %v1242 = vmul.f32 %v1226, 0.70710677
  %v1243 = vmul.f32 %v1229, 0.70710677
  %vm1244 = vcmp.ge.f32.partialorder %v1238, 0.0
  %vm1245 = vcmp.ge.f32.partialorder %v1239, 0.0
  %vm1246 = vcmp.ge.f32.partialorder %v1240, 0.0
  %vm1247 = vcmp.ge.f32.partialorder %v1241, 0.0
  %vm1248 = vcmp.ge.f32.partialorder %v1242, 0.0
  %vm1249 = vcmp.ge.f32.partialorder %v1243, 0.0
  %v1250 = vsel %vm1244, 1.0, -1.0
  %v1251 = vsel %vm1245, 1.0, -1.0
  %v1252 = vsel %vm1246, 1.0, -1.0
  %v1253 = vsel %vm1247, 1.0, -1.0
  %v1254 = vsel %vm1248, 1.0, -1.0
  %v1255 = vsel %vm1249, 1.0, -1.0
  %v1256 = vand.u32 2147483647, %v1238
  %v1257 = vand.u32 2147483647, %v1239
  %v1258 = vand.u32 2147483647, %v1240
  %v1259 = vand.u32 2147483647, %v1241
  %v1260 = vand.u32 2147483647, %v1242
  %v1261 = vand.u32 2147483647, %v1243
  %v1262 = vmul.f32 %v1256, 0.3275911
  %v1263 = vmul.f32 %v1257, 0.3275911
  %v1264 = vmul.f32 %v1258, 0.3275911
  %v1265 = vmul.f32 %v1259, 0.3275911
  %v1266 = vmul.f32 %v1260, 0.3275911
  %v1267 = vmul.f32 %v1261, 0.3275911
  %v1268 = vadd.f32 %v1262, 1.0
  %v1269 = vadd.f32 %v1263, 1.0
  %v1270 = vadd.f32 %v1264, 1.0
  %v1271 = vadd.f32 %v1265, 1.0
  %v1272 = vadd.f32 %v1266, 1.0
  %v1273 = vadd.f32 %v1267, 1.0
  %v1274 = vrcp.pop %v1268
  %v1275 = vmul.f32 1.0, %v1274
  %v1276 = vrcp.pop %v1269
  %v1277 = vmul.f32 1.0, %v1276
  %v1278 = vrcp.pop %v1270
  %v1279 = vmul.f32 1.0, %v1278
  %v1280 = vrcp.pop %v1271
  %v1281 = vmul.f32 1.0, %v1280
  %v1282 = vrcp.pop %v1272
  %v1283 = vmul.f32 1.0, %v1282
  %v1284 = vrcp.pop %v1273
  %v1285 = vmul.f32 1.0, %v1284
  %v1286 = vmul.f32 %v1275, 1.0614054
  %v1287 = vmul.f32 %v1277, 1.0614054
  %v1288 = vmul.f32 %v1279, 1.0614054
  %v1289 = vmul.f32 %v1281, 1.0614054
  %v1290 = vmul.f32 %v1283, 1.0614054
  %v1291 = vmul.f32 %v1285, 1.0614054
  %v1292 = vadd.f32 %v1286, -1.4531521
  %v1293 = vadd.f32 %v1287, -1.4531521
  %v1294 = vadd.f32 %v1288, -1.4531521
  %v1295 = vadd.f32 %v1289, -1.4531521
  %v1296 = vadd.f32 %v1290, -1.4531521
  %v1297 = vadd.f32 %v1291, -1.4531521
  %v1298 = vmul.f32 %v1292, %v1275
  %v1299 = vmul.f32 %v1293, %v1277
  %v1300 = vmul.f32 %v1294, %v1279
  %v1301 = vmul.f32 %v1295, %v1281
  %v1302 = vmul.f32 %v1296, %v1283
  %v1303 = vmul.f32 %v1297, %v1285
  %v1304 = vadd.f32 %v1298, 1.4214138
  %v1305 = vadd.f32 %v1299, 1.4214138
  %v1306 = vadd.f32 %v1300, 1.4214138
  %v1307 = vadd.f32 %v1301, 1.4214138
  %v1308 = vadd.f32 %v1302, 1.4214138
  %v1309 = vadd.f32 %v1303, 1.4214138
  %v1310 = vmul.f32 %v1304, %v1275
  %v1311 = vmul.f32 %v1305, %v1277
  %v1312 = vmul.f32 %v1306, %v1279
  %v1313 = vmul.f32 %v1307, %v1281
  %v1314 = vmul.f32 %v1308, %v1283
  %v1315 = vmul.f32 %v1309, %v1285
  %v1316 = vadd.f32 %v1310, -0.28449672
  %v1317 = vadd.f32 %v1311, -0.28449672
  %v1318 = vadd.f32 %v1312, -0.28449672
  %v1319 = vadd.f32 %v1313, -0.28449672
  %v1320 = vadd.f32 %v1314, -0.28449672
  %v1321 = vadd.f32 %v1315, -0.28449672
  %v1322 = vmul.f32 %v1316, %v1275
  %v1323 = vmul.f32 %v1317, %v1277
  %v1324 = vmul.f32 %v1318, %v1279
  %v1325 = vmul.f32 %v1319, %v1281
  %v1326 = vmul.f32 %v1320, %v1283
  %v1327 = vmul.f32 %v1321, %v1285
  %v1328 = vadd.f32 %v1322, 0.2548296
  %v1329 = vadd.f32 %v1323, 0.2548296
  %v1330 = vadd.f32 %v1324, 0.2548296
  %v1331 = vadd.f32 %v1325, 0.2548296
  %v1332 = vadd.f32 %v1326, 0.2548296
  %v1333 = vadd.f32 %v1327, 0.2548296
  %v1334 = vmul.f32 %v1328, %v1275
  %v1335 = vmul.f32 %v1329, %v1277
  %v1336 = vmul.f32 %v1330, %v1279
  %v1337 = vmul.f32 %v1331, %v1281
  %v1338 = vmul.f32 %v1332, %v1283
  %v1339 = vmul.f32 %v1333, %v1285
  %v1340 = vsub.f32 0.0, %v1256
  %v1341 = vsub.f32 0.0, %v1257
  %v1342 = vsub.f32 0.0, %v1258
  %v1343 = vsub.f32 0.0, %v1259
  %v1344 = vsub.f32 0.0, %v1260
  %v1345 = vsub.f32 0.0, %v1261
  %v1346 = vmul.f32 %v1340, %v1256
  %v1347 = vmul.f32 %v1341, %v1257
  %v1348 = vmul.f32 %v1342, %v1258
  %v1349 = vmul.f32 %v1343, %v1259
  %v1350 = vmul.f32 %v1344, %v1260
  %v1351 = vmul.f32 %v1345, %v1261
  %v1352 = vmul.f32 %v1346, 1.442695
  %v1353 = vpow.pop %v1352
  %v1354 = vmul.f32 %v1347, 1.442695
  %v1355 = vpow.pop %v1354
  %v1356 = vmul.f32 %v1348, 1.442695
  %v1357 = vpow.pop %v1356
  %v1358 = vmul.f32 %v1349, 1.442695
  %v1359 = vpow.pop %v1358
  %v1360 = vmul.f32 %v1350, 1.442695
  %v1361 = vpow.pop %v1360
  %v1362 = vmul.f32 %v1351, 1.442695
  %v1363 = vpow.pop %v1362
  %v1364 = vmul.f32 %v1334, %v1353
  %v1365 = vmul.f32 %v1335, %v1355
  %v1366 = vmul.f32 %v1336, %v1357
  %v1367 = vmul.f32 %v1337, %v1359
  %v1368 = vmul.f32 %v1338, %v1361
  %v1369 = vmul.f32 %v1339, %v1363
  %v1370 = vsub.f32 1.0, %v1364
  %v1371 = vsub.f32 1.0, %v1365
  %v1372 = vsub.f32 1.0, %v1366
  %v1373 = vsub.f32 1.0, %v1367
  %v1374 = vsub.f32 1.0, %v1368
  %v1375 = vsub.f32 1.0, %v1369
  %v1376 = vmul.f32 %v1250, %v1370
  %v1377 = vmul.f32 %v1251, %v1371
  %v1378 = vmul.f32 %v1252, %v1372
  %v1379 = vmul.f32 %v1253, %v1373
  %v1380 = vmul.f32 %v1254, %v1374
  %v1381 = vmul.f32 %v1255, %v1375
  %v1382 = vadd.f32 %v1376, 1.0
  %v1383 = vadd.f32 %v1377, 1.0
  %v1384 = vadd.f32 %v1378, 1.0
  %v1385 = vadd.f32 %v1379, 1.0
  %v1386 = vadd.f32 %v1380, 1.0
  %v1387 = vadd.f32 %v1381, 1.0
  %v1388 = vmul.f32 %v1232, %v1382
  %v1389 = vmul.f32 %v1233, %v1383
  %v1390 = vmul.f32 %v1234, %v1384
  %v1391 = vmul.f32 %v1235, %v1385
  %v1392 = vmul.f32 %v1236, %v1386
  %v1393 = vmul.f32 %v1237, %v1387
  %v1394 = vadd.f32 %v1022, %v1388
  %v1395 = vadd.f32 %v1023, %v1389
  %v1396 = vadd.f32 %v1024, %v1390
  %v1397 = vadd.f32 %v1025, %v1391
  %v1398 = vadd.f32 %v1026, %v1392
  %v1399 = vadd.f32 %v1027, %v1393
  %1400 = vadd.xlane.f32.xlu0 %v1394
  %v1401 = vpop.xlane.xlu0 %1400
  %1402 = vadd.xlane.f32.xlu0 %v1395
  %v1403 = vpop.xlane.xlu0 %1402
  %1404 = vadd.xlane.f32.xlu0 %v1396
  %v1405 = vpop.xlane.xlu0 %1404
  %1406 = vadd.xlane.f32.xlu0 %v1397
  %v1407 = vpop.xlane.xlu0 %1406
  %1408 = vadd.xlane.f32.xlu0 %v1398
  %v1409 = vpop.xlane.xlu0 %1408
  %1410 = vadd.xlane.f32.xlu0 %v1399
  %v1411 = vpop.xlane.xlu0 %1410
  %v1412 = vmul.f32 %v1401, %v298
  %v1413 = vmul.f32 %v1403, %v298
  %v1414 = vmul.f32 %v1405, %v298
  %v1415 = vmul.f32 %v1407, %v298
  %v1416 = vmul.f32 %v1409, %v298
  %v1417 = vmul.f32 %v1411, %v298
  %v1418 = vsub.f32 %v1394, %v1412
  %v1419 = vsub.f32 %v1395, %v1413
  %v1420 = vsub.f32 %v1396, %v1414
  %v1421 = vsub.f32 %v1397, %v1415
  %v1422 = vsub.f32 %v1398, %v1416
  %v1423 = vsub.f32 %v1399, %v1417
  %v1424 = vmul.f32 %v1418, %v1418
  %v1425 = vmul.f32 %v1419, %v1419
  %v1426 = vmul.f32 %v1420, %v1420
  %v1427 = vmul.f32 %v1421, %v1421
  %v1428 = vmul.f32 %v1422, %v1422
  %v1429 = vmul.f32 %v1423, %v1423
  %1430 = vadd.xlane.f32.xlu0 %v1424
  %v1431 = vpop.xlane.xlu0 %1430
  %1432 = vadd.xlane.f32.xlu0 %v1425
  %v1433 = vpop.xlane.xlu0 %1432
  %1434 = vadd.xlane.f32.xlu0 %v1426
  %v1435 = vpop.xlane.xlu0 %1434
  %1436 = vadd.xlane.f32.xlu0 %v1427
  %v1437 = vpop.xlane.xlu0 %1436
  %1438 = vadd.xlane.f32.xlu0 %v1428
  %v1439 = vpop.xlane.xlu0 %1438
  %1440 = vadd.xlane.f32.xlu0 %v1429
  %v1441 = vpop.xlane.xlu0 %1440
  %v1442 = vmul.f32 %v1431, %v298
  %v1443 = vmul.f32 %v1433, %v298
  %v1444 = vmul.f32 %v1435, %v298
  %v1445 = vmul.f32 %v1437, %v298
  %v1446 = vmul.f32 %v1439, %v298
  %v1447 = vmul.f32 %v1441, %v298
  %v1448 = vadd.f32 %v1442, 1e-05
  %v1449 = vadd.f32 %v1443, 1e-05
  %v1450 = vadd.f32 %v1444, 1e-05
  %v1451 = vadd.f32 %v1445, 1e-05
  %v1452 = vadd.f32 %v1446, 1e-05
  %v1453 = vadd.f32 %v1447, 1e-05
  %v1454 = vrsqrt.pop %v1448
  %v1455 = vrsqrt.pop %v1449
  %v1456 = vrsqrt.pop %v1450
  %v1457 = vrsqrt.pop %v1451
  %v1458 = vrsqrt.pop %v1452
  %v1459 = vrsqrt.pop %v1453
  %v1460 = vmul.f32 %v1418, %v1454
  %v1461 = vmul.f32 %v1419, %v1455
  %v1462 = vmul.f32 %v1420, %v1456
  %v1463 = vmul.f32 %v1421, %v1457
  %v1464 = vmul.f32 %v1422, %v1458
  %v1465 = vmul.f32 %v1423, %v1459
  %v1466 = vmul.f32 %v1460, %v357
  %v1467 = vmul.f32 %v1461, %v357
  %v1468 = vmul.f32 %v1462, %v357
  %v1469 = vmul.f32 %v1463, %v357
  %v1470 = vmul.f32 %v1464, %v357
  %v1471 = vmul.f32 %v1465, %v357
  %v1472 = vadd.f32 %v1466, %v369
  %v1473 = vadd.f32 %v1467, %v369
  %v1474 = vadd.f32 %v1468, %v369
  %v1475 = vadd.f32 %v1469, %v369
  %v1476 = vadd.f32 %v1470, %v369
  %v1477 = vadd.f32 %v1471, %v369
  %v1478 = vpack.c.bf16 %v1473, %v1472
  %v1479 = vpack.c.bf16 %v1475, %v1474
  %v1480 = vpack.c.bf16 %v1477, %v1476
  %1481 = vmatprep.subr.bf16.mxu0 %v498
  %1482 = vmatpush1.bf16.msra.mxu0 %v497
  %1483 = vmatprep.subr.bf16.mxu0 %v495
  %1484 = vmatpush1.bf16.msra.mxu0 %v494
  %1485 = vmatprep.subr.bf16.mxu0 %v492
  %1486 = vmatpush1.bf16.msra.mxu0 %v491
  %1487 = vmatprep.subr.bf16.mxu0 %v489
  %1488 = vmatpush1.bf16.msra.mxu0 %v488
  %1489 = vmatprep.subr.bf16.mxu0 %v486
  %1490 = vmatpush1.bf16.msra.mxu0 %v485
  %1491 = vmatprep.subr.bf16.mxu0 %v483
  %1492 = vmatpush1.bf16.msra.mxu0 %v482
  %1493 = vmatprep.subr.bf16.mxu0 %v480
  %1494 = vmatpush1.bf16.msra.mxu0 %v479
  %1495 = vmatprep.subr.bf16.mxu0 %v477
  %1496 = vmatpush1.bf16.msra.mxu0 %v476
  %1497 = vmatprep.subr.bf16.mxu0 0
  %1498 = vmatpush2.bf16.msra.mxu0 0
  %1499 = vmatprep.subr.bf16.mxu0 0
  %1500 = vmatpush2.bf16.msra.mxu0 0
  %1501 = vmatprep.subr.bf16.mxu0 0
  %1502 = vmatpush2.bf16.msra.mxu0 0
  %1503 = vmatprep.subr.bf16.mxu0 0
  %1504 = vmatpush2.bf16.msra.mxu0 0
  %1505 = vmatprep.subr.bf16.mxu0 0
  %1506 = vmatpush2.bf16.msra.mxu0 0
  %1507 = vmatprep.subr.bf16.mxu0 0
  %1508 = vmatpush2.bf16.msra.mxu0 0
  %1509 = vmatprep.subr.bf16.mxu0 0
  %1510 = vmatpush2.bf16.msra.mxu0 0
  %1511 = vmatprep.subr.bf16.mxu0 0
  %1512 = vmatpush2.bf16.msra.mxu0 0
  %1513 = vmatprep.mubr.bf16.mxu0 0
  %1514 = vmatmul.mubr.bf16.gmra.mxu0 %v1478
  %v1515 = vpop.f32.mrf.mxu0
  %v1516 = vadd.f32 %v384, %v1515
  %v1517 = vpop.f32.mrf.mxu0
  %v1518 = vadd.f32 %v388, %v1517
  %v1519 = vpop.f32.mrf.mxu0
  %v1520 = vadd.f32 %v384, %v1519
  %v1521 = vpop.f32.mrf.mxu0
  %v1522 = vadd.f32 %v388, %v1521
  %1523 = vmatprep.mubr.bf16.mxu0 0
  %1524 = vmatmul.mubr.bf16.gmra.mxu0 %v1479
  %v1525 = vpop.f32.mrf.mxu0
  %v1526 = vadd.f32 %v384, %v1525
  %v1527 = vpop.f32.mrf.mxu0
  %v1528 = vadd.f32 %v388, %v1527
  %v1529 = vpop.f32.mrf.mxu0
  %v1530 = vadd.f32 %v384, %v1529
  %v1531 = vpop.f32.mrf.mxu0
  %v1532 = vadd.f32 %v388, %v1531
  %1533 = vmatprep.mubr.bf16.mxu0 0
  %1534 = vmatmul.mubr.bf16.gmra.mxu0 %v1480
  %v1535 = vpop.f32.mrf.mxu0
  %v1536 = vadd.f32 %v384, %v1535
  %v1537 = vpop.f32.mrf.mxu0
  %v1538 = vadd.f32 %v388, %v1537
  %v1539 = vpop.f32.mrf.mxu0
  %v1540 = vadd.f32 %v384, %v1539
  %v1541 = vpop.f32.mrf.mxu0
  %v1542 = vadd.f32 %v388, %v1541
  %1543 = vdwg.mxu0
  %1544 = vmatprep.subr.bf16.mxu0 0
  %1545 = vmatpush1.bf16.msra.mxu0 %v499
  %1546 = vmatprep.subr.bf16.mxu0 0
  %1547 = vmatpush1.bf16.msra.mxu0 %v496
  %1548 = vmatprep.subr.bf16.mxu0 0
  %1549 = vmatpush1.bf16.msra.mxu0 %v493
  %1550 = vmatprep.subr.bf16.mxu0 0
  %1551 = vmatpush1.bf16.msra.mxu0 %v490
  %1552 = vmatprep.subr.bf16.mxu0 0
  %1553 = vmatpush1.bf16.msra.mxu0 %v487
  %1554 = vmatprep.subr.bf16.mxu0 0
  %1555 = vmatpush1.bf16.msra.mxu0 %v484
  %1556 = vmatprep.subr.bf16.mxu0 0
  %1557 = vmatpush1.bf16.msra.mxu0 %v481
  %1558 = vmatprep.subr.bf16.mxu0 0
  %1559 = vmatpush1.bf16.msra.mxu0 %v478
  %1560 = vmatprep.subr.bf16.mxu0 0
  %1561 = vmatpush2.bf16.msra.mxu0 0
  %1562 = vmatprep.subr.bf16.mxu0 0
  %1563 = vmatpush2.bf16.msra.mxu0 0
  %1564 = vmatprep.subr.bf16.mxu0 0
  %1565 = vmatpush2.bf16.msra.mxu0 0
  %1566 = vmatprep.subr.bf16.mxu0 0
  %1567 = vmatpush2.bf16.msra.mxu0 0
  %1568 = vmatprep.subr.bf16.mxu0 0
  %1569 = vmatpush2.bf16.msra.mxu0 0
  %1570 = vmatprep.subr.bf16.mxu0 0
  %1571 = vmatpush2.bf16.msra.mxu0 0
  %1572 = vmatprep.subr.bf16.mxu0 0
  %1573 = vmatpush2.bf16.msra.mxu0 0
  %1574 = vmatprep.subr.bf16.mxu0 0
  %1575 = vmatpush2.bf16.msra.mxu0 0
  %1576 = vmatprep.mubr.bf16.mxu0 0
  %1577 = vmatmul.mubr.bf16.gmra.mxu0 %v1478
  %v1578 = vpop.f32.mrf.mxu0
  %v1579 = vadd.f32 %v392, %v1578
  %v1580 = vpop.f32.mrf.mxu0
  %v1581 = vpop.f32.mrf.mxu0
  %v1582 = vadd.f32 %v392, %v1581
  %v1583 = vpop.f32.mrf.mxu0
  %1584 = vmatprep.mubr.bf16.mxu0 0
  %1585 = vmatmul.mubr.bf16.gmra.mxu0 %v1479
  %v1586 = vpop.f32.mrf.mxu0
  %v1587 = vadd.f32 %v392, %v1586
  %v1588 = vpop.f32.mrf.mxu0
  %v1589 = vpop.f32.mrf.mxu0
  %v1590 = vadd.f32 %v392, %v1589
  %v1591 = vpop.f32.mrf.mxu0
  %1592 = vmatprep.mubr.bf16.mxu0 0
  %1593 = vmatmul.mubr.bf16.gmra.mxu0 %v1480
  %v1594 = vpop.f32.mrf.mxu0
  %v1595 = vadd.f32 %v392, %v1594
  %v1596 = vpop.f32.mrf.mxu0
  %v1597 = vpop.f32.mrf.mxu0
  %v1598 = vadd.f32 %v392, %v1597
  %v1599 = vpop.f32.mrf.mxu0
  %1600 = vdwg.mxu0
  %v1601 = vmul.f32 %v1516, %v1518
  %v1602 = vmul.f32 %v1520, %v1522
  %v1603 = vmul.f32 %v1526, %v1528
  %v1604 = vmul.f32 %v1530, %v1532
  %v1605 = vmul.f32 %v1536, %v1538
  %v1606 = vmul.f32 %v1540, %v1542
  %v1607 = vpack.c.bf16 %v1602, %v1601
  %v1608 = vpack.c.bf16 %v1604, %v1603
  %v1609 = vpack.c.bf16 %v1606, %v1605
  %1610 = vmatprep.subr.bf16.mxu0 0
  %1611 = vmatpush1.bf16.msra.mxu0 %v692
  %1612 = vmatprep.subr.bf16.mxu0 0
  %1613 = vmatpush1.bf16.msra.mxu0 %v691
  %1614 = vmatprep.subr.bf16.mxu0 0
  %1615 = vmatpush1.bf16.msra.mxu0 %v690
  %1616 = vmatprep.subr.bf16.mxu0 0
  %1617 = vmatpush1.bf16.msra.mxu0 %v689
  %1618 = vmatprep.subr.bf16.mxu0 0
  %1619 = vmatpush1.bf16.msra.mxu0 %v688
  %1620 = vmatprep.subr.bf16.mxu0 0
  %1621 = vmatpush1.bf16.msra.mxu0 %v687
  %1622 = vmatprep.subr.bf16.mxu0 0
  %1623 = vmatpush1.bf16.msra.mxu0 %v686
  %1624 = vmatprep.subr.bf16.mxu0 0
  %1625 = vmatpush1.bf16.msra.mxu0 %v685
  %1626 = vmatprep.subr.bf16.mxu0 0
  %1627 = vmatpush2.bf16.msra.mxu0 0
  %1628 = vmatprep.subr.bf16.mxu0 0
  %1629 = vmatpush2.bf16.msra.mxu0 0
  %1630 = vmatprep.subr.bf16.mxu0 0
  %1631 = vmatpush2.bf16.msra.mxu0 0
  %1632 = vmatprep.subr.bf16.mxu0 0
  %1633 = vmatpush2.bf16.msra.mxu0 0
  %1634 = vmatprep.subr.bf16.mxu0 0
  %1635 = vmatpush2.bf16.msra.mxu0 0
  %1636 = vmatprep.subr.bf16.mxu0 0
  %1637 = vmatpush2.bf16.msra.mxu0 0
  %1638 = vmatprep.subr.bf16.mxu0 0
  %1639 = vmatpush2.bf16.msra.mxu0 0
  %1640 = vmatprep.subr.bf16.mxu0 0
  %1641 = vmatpush2.bf16.msra.mxu0 0
  %1642 = vmatprep.mubr.bf16.mxu0 0
  %1643 = vmatmul.mubr.bf16.gmra.mxu0 %v1607
  %v1644 = vpop.f32.mrf.mxu0
  %v1645 = vadd.f32 0.0, %v1644
  %v1646 = vpop.f32.mrf.mxu0
  %v1647 = vpop.f32.mrf.mxu0
  %v1648 = vadd.f32 0.0, %v1647
  %v1649 = vpop.f32.mrf.mxu0
  %1650 = vmatprep.mubr.bf16.mxu0 0
  %1651 = vmatmul.mubr.bf16.gmra.mxu0 %v1608
  %v1652 = vpop.f32.mrf.mxu0
  %v1653 = vadd.f32 0.0, %v1652
  %v1654 = vpop.f32.mrf.mxu0
  %v1655 = vpop.f32.mrf.mxu0
  %v1656 = vadd.f32 0.0, %v1655
  %v1657 = vpop.f32.mrf.mxu0
  %1658 = vmatprep.mubr.bf16.mxu0 0
  %1659 = vmatmul.mubr.bf16.gmra.mxu0 %v1609
  %v1660 = vpop.f32.mrf.mxu0
  %v1661 = vadd.f32 0.0, %v1660
  %v1662 = vpop.f32.mrf.mxu0
  %v1663 = vpop.f32.mrf.mxu0
  %v1664 = vadd.f32 0.0, %v1663
  %v1665 = vpop.f32.mrf.mxu0
  %1666 = vdwg.mxu0
  %v1667 = vmul.f32 %v1516, %v1532
  %v1668 = vmul.f32 %v1520, %v1538
  %v1669 = vmul.f32 %v1526, %v1542
  %v1670 = vmul.f32 %v1530, %v1518
  %v1671 = vmul.f32 %v1536, %v1522
  %v1672 = vmul.f32 %v1540, %v1528
  %v1673 = vpack.c.bf16 %v1668, %v1667
  %v1674 = vpack.c.bf16 %v1670, %v1669
  %v1675 = vpack.c.bf16 %v1672, %v1671
  %1676 = vmatprep.subr.bf16.mxu0 0
  %1677 = vmatpush1.bf16.msra.mxu0 %v692
  %1678 = vmatprep.subr.bf16.mxu0 0
  %1679 = vmatpush1.bf16.msra.mxu0 %v691
  %1680 = vmatprep.subr.bf16.mxu0 0
  %1681 = vmatpush1.bf16.msra.mxu0 %v690
  %1682 = vmatprep.subr.bf16.mxu0 0
  %1683 = vmatpush1.bf16.msra.mxu0 %v689
  %1684 = vmatprep.subr.bf16.mxu0 0
  %1685 = vmatpush1.bf16.msra.mxu0 %v688
  %1686 = vmatprep.subr.bf16.mxu0 0
  %1687 = vmatpush1.bf16.msra.mxu0 %v687
  %1688 = vmatprep.subr.bf16.mxu0 0
  %1689 = vmatpush1.bf16.msra.mxu0 %v686
  %1690 = vmatprep.subr.bf16.mxu0 0
  %1691 = vmatpush1.bf16.msra.mxu0 %v685
  %1692 = vmatprep.subr.bf16.mxu0 0
  %1693 = vmatpush2.bf16.msra.mxu0 0
  %1694 = vmatprep.subr.bf16.mxu0 0
  %1695 = vmatpush2.bf16.msra.mxu0 0
  %1696 = vmatprep.subr.bf16.mxu0 0
  %1697 = vmatpush2.bf16.msra.mxu0 0
  %1698 = vmatprep.subr.bf16.mxu0 0
  %1699 = vmatpush2.bf16.msra.mxu0 0
  %1700 = vmatprep.subr.bf16.mxu0 0
  %1701 = vmatpush2.bf16.msra.mxu0 0
  %1702 = vmatprep.subr.bf16.mxu0 0
  %1703 = vmatpush2.bf16.msra.mxu0 0
  %1704 = vmatprep.subr.bf16.mxu0 0
  %1705 = vmatpush2.bf16.msra.mxu0 0
  %1706 = vmatprep.subr.bf16.mxu0 0
  %1707 = vmatpush2.bf16.msra.mxu0 0
  %1708 = vmatprep.mubr.bf16.mxu0 0
  %1709 = vmatmul.mubr.bf16.gmra.mxu0 %v1673
  %v1710 = vpop.f32.mrf.mxu0
  %v1711 = vadd.f32 0.0, %v1710
  %v1712 = vpop.f32.mrf.mxu0
  %v1713 = vpop.f32.mrf.mxu0
  %v1714 = vadd.f32 0.0, %v1713
  %v1715 = vpop.f32.mrf.mxu0
  %1716 = vmatprep.mubr.bf16.mxu0 0
  %1717 = vmatmul.mubr.bf16.gmra.mxu0 %v1674
  %v1718 = vpop.f32.mrf.mxu0
  %v1719 = vadd.f32 0.0, %v1718
  %v1720 = vpop.f32.mrf.mxu0
  %v1721 = vpop.f32.mrf.mxu0
  %v1722 = vadd.f32 0.0, %v1721
  %v1723 = vpop.f32.mrf.mxu0
  %1724 = vmatprep.mubr.bf16.mxu0 0
  %1725 = vmatmul.mubr.bf16.gmra.mxu0 %v1675
  %v1726 = vpop.f32.mrf.mxu0
  %v1727 = vadd.f32 0.0, %v1726
  %v1728 = vpop.f32.mrf.mxu0
  %v1729 = vpop.f32.mrf.mxu0
  %v1730 = vadd.f32 0.0, %v1729
  %v1731 = vpop.f32.mrf.mxu0
  %1732 = vdwg.mxu0
  %v1733 = vmax.f32 %v1645, %v1711
  %v1734 = vmax.f32 %v1648, %v1714
  %v1735 = vmax.f32 %v1653, %v1719
  %v1736 = vmax.f32 %v1656, %v1722
  %v1737 = vmax.f32 %v1661, %v1727
  %v1738 = vmax.f32 %v1664, %v1730
  %v1739 = vsub.f32 %v1645, %v1733
  %v1740 = vsub.f32 %v1648, %v1734
  %v1741 = vsub.f32 %v1653, %v1735
  %v1742 = vsub.f32 %v1656, %v1736
  %v1743 = vsub.f32 %v1661, %v1737
  %v1744 = vsub.f32 %v1664, %v1738
  %v1745 = vmul.f32 %v1739, 1.442695
  %v1746 = vpow.pop %v1745
  %v1747 = vmul.f32 %v1740, 1.442695
  %v1748 = vpow.pop %v1747
  %v1749 = vmul.f32 %v1741, 1.442695
  %v1750 = vpow.pop %v1749
  %v1751 = vmul.f32 %v1742, 1.442695
  %v1752 = vpow.pop %v1751
  %v1753 = vmul.f32 %v1743, 1.442695
  %v1754 = vpow.pop %v1753
  %v1755 = vmul.f32 %v1744, 1.442695
  %v1756 = vpow.pop %v1755
  %v1757 = vsub.f32 %v1711, %v1733
  %v1758 = vsub.f32 %v1714, %v1734
  %v1759 = vsub.f32 %v1719, %v1735
  %v1760 = vsub.f32 %v1722, %v1736
  %v1761 = vsub.f32 %v1727, %v1737
  %v1762 = vsub.f32 %v1730, %v1738
  %v1763 = vmul.f32 %v1757, 1.442695
  %v1764 = vpow.pop %v1763
  %v1765 = vmul.f32 %v1758, 1.442695
  %v1766 = vpow.pop %v1765
  %v1767 = vmul.f32 %v1759, 1.442695
  %v1768 = vpow.pop %v1767
  %v1769 = vmul.f32 %v1760, 1.442695
  %v1770 = vpow.pop %v1769
  %v1771 = vmul.f32 %v1761, 1.442695
  %v1772 = vpow.pop %v1771
  %v1773 = vmul.f32 %v1762, 1.442695
  %v1774 = vpow.pop %v1773
  %v1775 = vmul.f32 %v1746, %v1579
  %v1776 = vmul.f32 %v1748, %v1582
  %v1777 = vmul.f32 %v1750, %v1587
  %v1778 = vmul.f32 %v1752, %v1590
  %v1779 = vmul.f32 %v1754, %v1595
  %v1780 = vmul.f32 %v1756, %v1598
  %v1781 = vmul.f32 %v1764, %v1590
  %v1782 = vmul.f32 %v1766, %v1595
  %v1783 = vmul.f32 %v1768, %v1598
  %v1784 = vmul.f32 %v1770, %v1579
  %v1785 = vmul.f32 %v1772, %v1582
  %v1786 = vmul.f32 %v1774, %v1587
  %v1787 = vadd.f32 %v1775, %v1781
  %v1788 = vadd.f32 %v1776, %v1782
  %v1789 = vadd.f32 %v1777, %v1783
  %v1790 = vadd.f32 %v1778, %v1784
  %v1791 = vadd.f32 %v1779, %v1785
  %v1792 = vadd.f32 %v1780, %v1786
  %v1793 = vadd.f32 %v1746, %v1764
  %v1794 = vadd.f32 %v1748, %v1766
  %v1795 = vadd.f32 %v1750, %v1768
  %v1796 = vadd.f32 %v1752, %v1770
  %v1797 = vadd.f32 %v1754, %v1772
  %v1798 = vadd.f32 %v1756, %v1774
  %v1799 = vrcp.pop %v1793
  %v1800 = vrcp.pop %v1794
  %v1801 = vrcp.pop %v1795
  %v1802 = vrcp.pop %v1796
  %v1803 = vrcp.pop %v1797
  %v1804 = vrcp.pop %v1798
  %v1805 = vmul.f32 %v1787, %v1799
  %v1806 = vmul.f32 %v1788, %v1800
  %v1807 = vmul.f32 %v1789, %v1801
  %v1808 = vmul.f32 %v1790, %v1802
  %v1809 = vmul.f32 %v1791, %v1803
  %v1810 = vmul.f32 %v1792, %v1804
  %v1811 = vpack.c.bf16 %v1806, %v1805
  %v1812 = vpack.c.bf16 %v1808, %v1807
  %v1813 = vpack.c.bf16 %v1810, %v1809
  %1814 = vmatprep.subr.bf16.mxu0 0
  %1815 = vmatpush1.bf16.msra.mxu0 %v944
  %1816 = vmatprep.subr.bf16.mxu0 0
  %1817 = vmatpush1.bf16.msra.mxu0 %v943
  %1818 = vmatprep.subr.bf16.mxu0 0
  %1819 = vmatpush1.bf16.msra.mxu0 %v942
  %1820 = vmatprep.subr.bf16.mxu0 0
  %1821 = vmatpush1.bf16.msra.mxu0 %v941
  %1822 = vmatprep.subr.bf16.mxu0 0
  %1823 = vmatpush1.bf16.msra.mxu0 %v940
  %1824 = vmatprep.subr.bf16.mxu0 0
  %1825 = vmatpush1.bf16.msra.mxu0 %v939
  %1826 = vmatprep.subr.bf16.mxu0 0
  %1827 = vmatpush1.bf16.msra.mxu0 %v938
  %1828 = vmatprep.subr.bf16.mxu0 0
  %1829 = vmatpush1.bf16.msra.mxu0 %v937
  %1830 = vmatprep.subr.bf16.mxu0 0
  %1831 = vmatpush2.bf16.msra.mxu0 0
  %1832 = vmatprep.subr.bf16.mxu0 0
  %1833 = vmatpush2.bf16.msra.mxu0 0
  %1834 = vmatprep.subr.bf16.mxu0 0
  %1835 = vmatpush2.bf16.msra.mxu0 0
  %1836 = vmatprep.subr.bf16.mxu0 0
  %1837 = vmatpush2.bf16.msra.mxu0 0
  %1838 = vmatprep.subr.bf16.mxu0 0
  %1839 = vmatpush2.bf16.msra.mxu0 0
  %1840 = vmatprep.subr.bf16.mxu0 0
  %1841 = vmatpush2.bf16.msra.mxu0 0
  %1842 = vmatprep.subr.bf16.mxu0 0
  %1843 = vmatpush2.bf16.msra.mxu0 0
  %1844 = vmatprep.subr.bf16.mxu0 0
  %1845 = vmatpush2.bf16.msra.mxu0 0
  %1846 = vmatprep.mubr.bf16.mxu0 0
  %1847 = vmatmul.mubr.bf16.gmra.mxu0 %v1811
  %v1848 = vpop.f32.mrf.mxu0
  %v1849 = vadd.f32 0.0, %v1848
  %v1850 = vpop.f32.mrf.mxu0
  %v1851 = vpop.f32.mrf.mxu0
  %v1852 = vadd.f32 0.0, %v1851
  %v1853 = vpop.f32.mrf.mxu0
  %1854 = vmatprep.mubr.bf16.mxu0 0
  %1855 = vmatmul.mubr.bf16.gmra.mxu0 %v1812
  %v1856 = vpop.f32.mrf.mxu0
  %v1857 = vadd.f32 0.0, %v1856
  %v1858 = vpop.f32.mrf.mxu0
  %v1859 = vpop.f32.mrf.mxu0
  %v1860 = vadd.f32 0.0, %v1859
  %v1861 = vpop.f32.mrf.mxu0
  %1862 = vmatprep.mubr.bf16.mxu0 0
  %1863 = vmatmul.mubr.bf16.gmra.mxu0 %v1813
  %v1864 = vpop.f32.mrf.mxu0
  %v1865 = vadd.f32 0.0, %v1864
  %v1866 = vpop.f32.mrf.mxu0
  %v1867 = vpop.f32.mrf.mxu0
  %v1868 = vadd.f32 0.0, %v1867
  %v1869 = vpop.f32.mrf.mxu0
  %1870 = vdwg.mxu0
  %v1871 = vadd.f32 %v1394, %v1849
  %v1872 = vadd.f32 %v1395, %v1852
  %v1873 = vadd.f32 %v1396, %v1857
  %v1874 = vadd.f32 %v1397, %v1860
  %v1875 = vadd.f32 %v1398, %v1865
  %v1876 = vadd.f32 %v1399, %v1868
  %v1877 = vadd.f32 %v1871, %v1020
  %v1878 = vadd.f32 %v1872, %v1020
  %v1879 = vadd.f32 %v1873, %v1020
  %v1880 = vadd.f32 %v1874, %v1020
  %v1881 = vadd.f32 %v1875, %v1020
  %v1882 = vadd.f32 %v1876, %v1020
  %1883 = vadd.xlane.f32.xlu0 %v1877
  %v1884 = vpop.xlane.xlu0 %1883
  %1885 = vadd.xlane.f32.xlu0 %v1878
  %v1886 = vpop.xlane.xlu0 %1885
  %1887 = vadd.xlane.f32.xlu0 %v1879
  %v1888 = vpop.xlane.xlu0 %1887
  %1889 = vadd.xlane.f32.xlu0 %v1880
  %v1890 = vpop.xlane.xlu0 %1889
  %1891 = vadd.xlane.f32.xlu0 %v1881
  %v1892 = vpop.xlane.xlu0 %1891
  %1893 = vadd.xlane.f32.xlu0 %v1882
  %v1894 = vpop.xlane.xlu0 %1893
  %v1895 = vmul.f32 %v1884, %v298
  %v1896 = vmul.f32 %v1886, %v298
  %v1897 = vmul.f32 %v1888, %v298
  %v1898 = vmul.f32 %v1890, %v298
  %v1899 = vmul.f32 %v1892, %v298
  %v1900 = vmul.f32 %v1894, %v298
  %v1901 = vsub.f32 %v1877, %v1895
  %v1902 = vsub.f32 %v1878, %v1896
  %v1903 = vsub.f32 %v1879, %v1897
  %v1904 = vsub.f32 %v1880, %v1898
  %v1905 = vsub.f32 %v1881, %v1899
  %v1906 = vsub.f32 %v1882, %v1900
  %v1907 = vmul.f32 %v1901, %v1901
  %v1908 = vmul.f32 %v1902, %v1902
  %v1909 = vmul.f32 %v1903, %v1903
  %v1910 = vmul.f32 %v1904, %v1904
  %v1911 = vmul.f32 %v1905, %v1905
  %v1912 = vmul.f32 %v1906, %v1906
  %1913 = vadd.xlane.f32.xlu0 %v1907
  %v1914 = vpop.xlane.xlu0 %1913
  %1915 = vadd.xlane.f32.xlu0 %v1908
  %v1916 = vpop.xlane.xlu0 %1915
  %1917 = vadd.xlane.f32.xlu0 %v1909
  %v1918 = vpop.xlane.xlu0 %1917
  %1919 = vadd.xlane.f32.xlu0 %v1910
  %v1920 = vpop.xlane.xlu0 %1919
  %1921 = vadd.xlane.f32.xlu0 %v1911
  %v1922 = vpop.xlane.xlu0 %1921
  %1923 = vadd.xlane.f32.xlu0 %v1912
  %v1924 = vpop.xlane.xlu0 %1923
  %v1925 = vmul.f32 %v1914, %v298
  %v1926 = vmul.f32 %v1916, %v298
  %v1927 = vmul.f32 %v1918, %v298
  %v1928 = vmul.f32 %v1920, %v298
  %v1929 = vmul.f32 %v1922, %v298
  %v1930 = vmul.f32 %v1924, %v298
  %v1931 = vadd.f32 %v1925, 1e-05
  %v1932 = vadd.f32 %v1926, 1e-05
  %v1933 = vadd.f32 %v1927, 1e-05
  %v1934 = vadd.f32 %v1928, 1e-05
  %v1935 = vadd.f32 %v1929, 1e-05
  %v1936 = vadd.f32 %v1930, 1e-05
  %v1937 = vrsqrt.pop %v1931
  %v1938 = vrsqrt.pop %v1932
  %v1939 = vrsqrt.pop %v1933
  %v1940 = vrsqrt.pop %v1934
  %v1941 = vrsqrt.pop %v1935
  %v1942 = vrsqrt.pop %v1936
  %v1943 = vmul.f32 %v1901, %v1937
  %v1944 = vmul.f32 %v1902, %v1938
  %v1945 = vmul.f32 %v1903, %v1939
  %v1946 = vmul.f32 %v1904, %v1940
  %v1947 = vmul.f32 %v1905, %v1941
  %v1948 = vmul.f32 %v1906, %v1942
  %v1949 = vmul.f32 %v1943, %v1098
  %v1950 = vmul.f32 %v1944, %v1098
  %v1951 = vmul.f32 %v1945, %v1098
  %v1952 = vmul.f32 %v1946, %v1098
  %v1953 = vmul.f32 %v1947, %v1098
  %v1954 = vmul.f32 %v1948, %v1098
  %v1955 = vadd.f32 %v1949, %v1110
  %v1956 = vadd.f32 %v1950, %v1110
  %v1957 = vadd.f32 %v1951, %v1110
  %v1958 = vadd.f32 %v1952, %v1110
  %v1959 = vadd.f32 %v1953, %v1110
  %v1960 = vadd.f32 %v1954, %v1110
  %v1961 = vpack.c.bf16 %v1956, %v1955
  %v1962 = vpack.c.bf16 %v1958, %v1957
  %v1963 = vpack.c.bf16 %v1960, %v1959
  %1964 = vmatprep.subr.bf16.mxu0 0
  %1965 = vmatpush1.bf16.msra.mxu0 %v1166
  %1966 = vmatprep.subr.bf16.mxu0 0
  %1967 = vmatpush1.bf16.msra.mxu0 %v1165
  %1968 = vmatprep.subr.bf16.mxu0 0
  %1969 = vmatpush1.bf16.msra.mxu0 %v1164
  %1970 = vmatprep.subr.bf16.mxu0 0
  %1971 = vmatpush1.bf16.msra.mxu0 %v1163
  %1972 = vmatprep.subr.bf16.mxu0 0
  %1973 = vmatpush1.bf16.msra.mxu0 %v1162
  %1974 = vmatprep.subr.bf16.mxu0 0
  %1975 = vmatpush1.bf16.msra.mxu0 %v1161
  %1976 = vmatprep.subr.bf16.mxu0 0
  %1977 = vmatpush1.bf16.msra.mxu0 %v1160
  %1978 = vmatprep.subr.bf16.mxu0 0
  %1979 = vmatpush1.bf16.msra.mxu0 %v1159
  %1980 = vmatprep.subr.bf16.mxu0 0
  %1981 = vmatpush2.bf16.msra.mxu0 0
  %1982 = vmatprep.subr.bf16.mxu0 0
  %1983 = vmatpush2.bf16.msra.mxu0 0
  %1984 = vmatprep.subr.bf16.mxu0 0
  %1985 = vmatpush2.bf16.msra.mxu0 0
  %1986 = vmatprep.subr.bf16.mxu0 0
  %1987 = vmatpush2.bf16.msra.mxu0 0
  %1988 = vmatprep.subr.bf16.mxu0 0
  %1989 = vmatpush2.bf16.msra.mxu0 0
  %1990 = vmatprep.subr.bf16.mxu0 0
  %1991 = vmatpush2.bf16.msra.mxu0 0
  %1992 = vmatprep.subr.bf16.mxu0 0
  %1993 = vmatpush2.bf16.msra.mxu0 0
  %1994 = vmatprep.subr.bf16.mxu0 0
  %1995 = vmatpush2.bf16.msra.mxu0 0
  %1996 = vmatprep.mubr.bf16.mxu0 0
  %1997 = vmatmul.mubr.bf16.gmra.mxu0 %v1961
  %v1998 = vpop.f32.mrf.mxu0
  %v1999 = vadd.f32 %v1125, %v1998
  %v2000 = vpop.f32.mrf.mxu0
  %v2001 = vpop.f32.mrf.mxu0
  %v2002 = vadd.f32 %v1125, %v2001
  %v2003 = vpop.f32.mrf.mxu0
  %2004 = vmatprep.mubr.bf16.mxu0 0
  %2005 = vmatmul.mubr.bf16.gmra.mxu0 %v1962
  %v2006 = vpop.f32.mrf.mxu0
  %v2007 = vadd.f32 %v1125, %v2006
  %v2008 = vpop.f32.mrf.mxu0
  %v2009 = vpop.f32.mrf.mxu0
  %v2010 = vadd.f32 %v1125, %v2009
  %v2011 = vpop.f32.mrf.mxu0
  %2012 = vmatprep.mubr.bf16.mxu0 0
  %2013 = vmatmul.mubr.bf16.gmra.mxu0 %v1963
  %v2014 = vpop.f32.mrf.mxu0
  %v2015 = vadd.f32 %v1125, %v2014
  %v2016 = vpop.f32.mrf.mxu0
  %v2017 = vpop.f32.mrf.mxu0
  %v2018 = vadd.f32 %v1125, %v2017
  %v2019 = vpop.f32.mrf.mxu0
  %2020 = vdwg.mxu0
  %v2021 = vmul.f32 %v1999, 0.5
  %v2022 = vmul.f32 %v2002, 0.5
  %v2023 = vmul.f32 %v2007, 0.5
  %v2024 = vmul.f32 %v2010, 0.5
  %v2025 = vmul.f32 %v2015, 0.5
  %v2026 = vmul.f32 %v2018, 0.5
  %v2027 = vmul.f32 %v1999, 0.70710677
  %v2028 = vmul.f32 %v2002, 0.70710677
  %v2029 = vmul.f32 %v2007, 0.70710677
  %v2030 = vmul.f32 %v2010, 0.70710677
  %v2031 = vmul.f32 %v2015, 0.70710677
  %v2032 = vmul.f32 %v2018, 0.70710677
  %vm2033 = vcmp.ge.f32.partialorder %v2027, 0.0
  %vm2034 = vcmp.ge.f32.partialorder %v2028, 0.0
  %vm2035 = vcmp.ge.f32.partialorder %v2029, 0.0
  %vm2036 = vcmp.ge.f32.partialorder %v2030, 0.0
  %vm2037 = vcmp.ge.f32.partialorder %v2031, 0.0
  %vm2038 = vcmp.ge.f32.partialorder %v2032, 0.0
  %v2039 = vsel %vm2033, 1.0, -1.0
  %v2040 = vsel %vm2034, 1.0, -1.0
  %v2041 = vsel %vm2035, 1.0, -1.0
  %v2042 = vsel %vm2036, 1.0, -1.0
  %v2043 = vsel %vm2037, 1.0, -1.0
  %v2044 = vsel %vm2038, 1.0, -1.0
  %v2045 = vand.u32 2147483647, %v2027
  %v2046 = vand.u32 2147483647, %v2028
  %v2047 = vand.u32 2147483647, %v2029
  %v2048 = vand.u32 2147483647, %v2030
  %v2049 = vand.u32 2147483647, %v2031
  %v2050 = vand.u32 2147483647, %v2032
  %v2051 = vmul.f32 %v2045, 0.3275911
  %v2052 = vmul.f32 %v2046, 0.3275911
  %v2053 = vmul.f32 %v2047, 0.3275911
  %v2054 = vmul.f32 %v2048, 0.3275911
  %v2055 = vmul.f32 %v2049, 0.3275911
  %v2056 = vmul.f32 %v2050, 0.3275911
  %v2057 = vadd.f32 %v2051, 1.0
  %v2058 = vadd.f32 %v2052, 1.0
  %v2059 = vadd.f32 %v2053, 1.0
  %v2060 = vadd.f32 %v2054, 1.0
  %v2061 = vadd.f32 %v2055, 1.0
  %v2062 = vadd.f32 %v2056, 1.0
  %v2063 = vrcp.pop %v2057
  %v2064 = vmul.f32 1.0, %v2063
  %v2065 = vrcp.pop %v2058
  %v2066 = vmul.f32 1.0, %v2065
  %v2067 = vrcp.pop %v2059
  %v2068 = vmul.f32 1.0, %v2067
  %v2069 = vrcp.pop %v2060
  %v2070 = vmul.f32 1.0, %v2069
  %v2071 = vrcp.pop %v2061
  %v2072 = vmul.f32 1.0, %v2071
  %v2073 = vrcp.pop %v2062
  %v2074 = vmul.f32 1.0, %v2073
  %v2075 = vmul.f32 %v2064, 1.0614054
  %v2076 = vmul.f32 %v2066, 1.0614054
  %v2077 = vmul.f32 %v2068, 1.0614054
  %v2078 = vmul.f32 %v2070, 1.0614054
  %v2079 = vmul.f32 %v2072, 1.0614054
  %v2080 = vmul.f32 %v2074, 1.0614054
  %v2081 = vadd.f32 %v2075, -1.4531521
  %v2082 = vadd.f32 %v2076, -1.4531521
  %v2083 = vadd.f32 %v2077, -1.4531521
  %v2084 = vadd.f32 %v2078, -1.4531521
  %v2085 = vadd.f32 %v2079, -1.4531521
  %v2086 = vadd.f32 %v2080, -1.4531521
  %v2087 = vmul.f32 %v2081, %v2064
  %v2088 = vmul.f32 %v2082, %v2066
  %v2089 = vmul.f32 %v2083, %v2068
  %v2090 = vmul.f32 %v2084, %v2070
  %v2091 = vmul.f32 %v2085, %v2072
  %v2092 = vmul.f32 %v2086, %v2074
  %v2093 = vadd.f32 %v2087, 1.4214138
  %v2094 = vadd.f32 %v2088, 1.4214138
  %v2095 = vadd.f32 %v2089, 1.4214138
  %v2096 = vadd.f32 %v2090, 1.4214138
  %v2097 = vadd.f32 %v2091, 1.4214138
  %v2098 = vadd.f32 %v2092, 1.4214138
  %v2099 = vmul.f32 %v2093, %v2064
  %v2100 = vmul.f32 %v2094, %v2066
  %v2101 = vmul.f32 %v2095, %v2068
  %v2102 = vmul.f32 %v2096, %v2070
  %v2103 = vmul.f32 %v2097, %v2072
  %v2104 = vmul.f32 %v2098, %v2074
  %v2105 = vadd.f32 %v2099, -0.28449672
  %v2106 = vadd.f32 %v2100, -0.28449672
  %v2107 = vadd.f32 %v2101, -0.28449672
  %v2108 = vadd.f32 %v2102, -0.28449672
  %v2109 = vadd.f32 %v2103, -0.28449672
  %v2110 = vadd.f32 %v2104, -0.28449672
  %v2111 = vmul.f32 %v2105, %v2064
  %v2112 = vmul.f32 %v2106, %v2066
  %v2113 = vmul.f32 %v2107, %v2068
  %v2114 = vmul.f32 %v2108, %v2070
  %v2115 = vmul.f32 %v2109, %v2072
  %v2116 = vmul.f32 %v2110, %v2074
  %v2117 = vadd.f32 %v2111, 0.2548296
  %v2118 = vadd.f32 %v2112, 0.2548296
  %v2119 = vadd.f32 %v2113, 0.2548296
  %v2120 = vadd.f32 %v2114, 0.2548296
  %v2121 = vadd.f32 %v2115, 0.2548296
  %v2122 = vadd.f32 %v2116, 0.2548296
  %v2123 = vmul.f32 %v2117, %v2064
  %v2124 = vmul.f32 %v2118, %v2066
  %v2125 = vmul.f32 %v2119, %v2068
  %v2126 = vmul.f32 %v2120, %v2070
  %v2127 = vmul.f32 %v2121, %v2072
  %v2128 = vmul.f32 %v2122, %v2074
  %v2129 = vsub.f32 0.0, %v2045
  %v2130 = vsub.f32 0.0, %v2046
  %v2131 = vsub.f32 0.0, %v2047
  %v2132 = vsub.f32 0.0, %v2048
  %v2133 = vsub.f32 0.0, %v2049
  %v2134 = vsub.f32 0.0, %v2050
  %v2135 = vmul.f32 %v2129, %v2045
  %v2136 = vmul.f32 %v2130, %v2046
  %v2137 = vmul.f32 %v2131, %v2047
  %v2138 = vmul.f32 %v2132, %v2048
  %v2139 = vmul.f32 %v2133, %v2049
  %v2140 = vmul.f32 %v2134, %v2050
  %v2141 = vmul.f32 %v2135, 1.442695
  %v2142 = vpow.pop %v2141
  %v2143 = vmul.f32 %v2136, 1.442695
  %v2144 = vpow.pop %v2143
  %v2145 = vmul.f32 %v2137, 1.442695
  %v2146 = vpow.pop %v2145
  %v2147 = vmul.f32 %v2138, 1.442695
  %v2148 = vpow.pop %v2147
  %v2149 = vmul.f32 %v2139, 1.442695
  %v2150 = vpow.pop %v2149
  %v2151 = vmul.f32 %v2140, 1.442695
  %v2152 = vpow.pop %v2151
  %v2153 = vmul.f32 %v2123, %v2142
  %v2154 = vmul.f32 %v2124, %v2144
  %v2155 = vmul.f32 %v2125, %v2146
  %v2156 = vmul.f32 %v2126, %v2148
  %v2157 = vmul.f32 %v2127, %v2150
  %v2158 = vmul.f32 %v2128, %v2152
  %v2159 = vsub.f32 1.0, %v2153
  %v2160 = vsub.f32 1.0, %v2154
  %v2161 = vsub.f32 1.0, %v2155
  %v2162 = vsub.f32 1.0, %v2156
  %v2163 = vsub.f32 1.0, %v2157
  %v2164 = vsub.f32 1.0, %v2158
  %v2165 = vmul.f32 %v2039, %v2159
  %v2166 = vmul.f32 %v2040, %v2160
  %v2167 = vmul.f32 %v2041, %v2161
  %v2168 = vmul.f32 %v2042, %v2162
  %v2169 = vmul.f32 %v2043, %v2163
  %v2170 = vmul.f32 %v2044, %v2164
  %v2171 = vadd.f32 %v2165, 1.0
  %v2172 = vadd.f32 %v2166, 1.0
  %v2173 = vadd.f32 %v2167, 1.0
  %v2174 = vadd.f32 %v2168, 1.0
  %v2175 = vadd.f32 %v2169, 1.0
  %v2176 = vadd.f32 %v2170, 1.0
  %v2177 = vmul.f32 %v2021, %v2171
  %v2178 = vmul.f32 %v2022, %v2172
  %v2179 = vmul.f32 %v2023, %v2173
  %v2180 = vmul.f32 %v2024, %v2174
  %v2181 = vmul.f32 %v2025, %v2175
  %v2182 = vmul.f32 %v2026, %v2176
  %v2183 = vadd.f32 %v1877, %v2177
  %v2184 = vadd.f32 %v1878, %v2178
  %v2185 = vadd.f32 %v1879, %v2179
  %v2186 = vadd.f32 %v1880, %v2180
  %v2187 = vadd.f32 %v1881, %v2181
  %v2188 = vadd.f32 %v1882, %v2182
  %2189 = vst [vmem:[%s14] sm:$0xff] %v2183
  %2190 = vst [vmem:[%s14 + $0x8] sm:$0xff] %v2184
  %2191 = vst [vmem:[%s14 + $0x10] sm:$0xff] %v2185
  %2192 = vst [vmem:[%s14 + $0x18] sm:$0xff] %v2186
  %2193 = vst [vmem:[%s14 + $0x20] sm:$0xff] %v2187
  %2194 = vst [vmem:[%s14 + $0x28] sm:$0xff] %v2188
  // Predicated region
  $region58: #{vision_transformer_forward.1} parent=0 // pred_check
    _
  $region59: #{vision_transformer_forward.1} parent=0 // pred_check_branch
    %2196 = sbr.rel (0) target = $region61
  $region60: #{vision_transformer_forward.1} parent=0 // pred_region
    _
  $region61: #{vision_transformer_forward.1} parent=0 // pred_fallthru
    _
  // Predicated region
  $region62: #{vision_transformer_forward.1} parent=0 // pred_check
    _
  $region63: #{vision_transformer_forward.1} parent=0 // pred_check_branch
    %2198 = sbr.rel (0) target = $region65
  $region64: #{vision_transformer_forward.1} parent=0 // pred_region
    _
  $region65: #{vision_transformer_forward.1} parent=0 // pred_fallthru
    _

</llo_original>
